<compile_context>
chip_gen: v6e
topology: v6e:2x2x1
jax: 0.10.0
libtpu: 0.0.40
codegen_flags: <defaults>
</compile_context>

<pallas_src>
import jax
import jax.numpy as jnp
from jax import lax
from jax.experimental import pallas as pl
from jax.experimental.pallas import tpu as pltpu

# ---- model hyper-parameters (consistent with the module ctor) --------------
N_EMBED = 32           # n_embed
N_HEADS = 4            # n_heads
BLOCK_SIZE = 8         # block_size == sequence length T
BATCH = 2              # batch_size
HIDDEN_MULT = 4        # hidden_multiplier
HEAD_DIM = N_EMBED // N_HEADS          # 8
FF_DIM = HIDDEN_MULT * N_EMBED         # 128
LN_EPS = 1e-5
LANES = 128
NEG_INF = -1e30

# ---- parameter-slab row layout (single (SLAB_ROWS, 128) f32 array) ---------
R_WQK = 0                        # (C,128): [:, :C]=Wq, [:, C:2C]=Wk, rest 0
R_WVO = R_WQK + N_EMBED          # (C,128): [:, h*C:(h+1)*C] = Wv_h @ Wo_h
R_W1 = R_WVO + N_EMBED           # (C,128): FFN first layer
R_W2 = R_W1 + N_EMBED            # (FF_DIM,128): [:, :C] = W2, rest 0
R_VEC = R_W2 + FF_DIM            # 8 LN/bias rows, payload left-aligned
(VEC_LN1_G, VEC_LN1_B, VEC_LN2_G, VEC_LN2_B,
 VEC_BQK, VEC_BATT, VEC_B1, VEC_B2) = range(8)
SLAB_ROWS = R_VEC + 8            # 232 rows (multiple of 8)


def _layernorm(x, gamma, beta):
    mu = jnp.mean(x, axis=-1, keepdims=True)
    var = jnp.mean((x - mu) ** 2, axis=-1, keepdims=True)
    return (x - mu) * lax.rsqrt(var + LN_EPS) * gamma + beta


def transformer_block_kernel(x_ref, slab_ref, o_ref):
    T, C, H, D, F = BLOCK_SIZE, N_EMBED, N_HEADS, HEAD_DIM, FF_DIM

    def vec(i, width):
        r = R_VEC + i
        return slab_ref[r:r + 1, 0:width]            # (1, width) SMALL row

    x = x_ref[...].reshape(T, C)                     # one batch element (8, 32)

    # ---------------- attention branch (pre-LN) ----------------
    h1 = _layernorm(x, vec(VEC_LN1_G, C), vec(VEC_LN1_B, C))

    # fused Q|K projection: one lane-dense matmul, bias added in padded domain
    qk = jnp.dot(h1, slab_ref[R_WQK:R_WQK + C, :],
                 preferred_element_type=jnp.float32) + vec(VEC_BQK, LANES)
    # V' projection with W_O pre-folded in (host-side): lane-dense (T, H*C)
    vvo = jnp.dot(h1, slab_ref[R_WVO:R_WVO + C, :],
                  preferred_element_type=jnp.float32)

    row_i = lax.broadcasted_iota(jnp.int32, (T, T), 0)
    col_i = lax.broadcasted_iota(jnp.int32, (T, T), 1)
    causal = col_i <= row_i

    scale = HEAD_DIM ** -0.5
    attn = jnp.zeros((T, C), jnp.float32)
    for hi in range(H):                              # static, unrolled
        qh = qk[:, hi * D:(hi + 1) * D]              # (T, D)
        kh = qk[:, C + hi * D:C + (hi + 1) * D]      # (T, D)
        s = lax.dot_general(qh, kh, (((1,), (1,)), ((), ())),
                            preferred_element_type=jnp.float32) * scale
        s = jnp.where(causal, s, NEG_INF)
        p = jnp.exp(s - jnp.max(s, axis=-1, keepdims=True))
        p = p / jnp.sum(p, axis=-1, keepdims=True)   # exact normalization
        # output projection already folded into vvo -> 32-lane-wide accumulate
        attn = attn + jnp.dot(p, vvo[:, hi * C:(hi + 1) * C],
                              preferred_element_type=jnp.float32)
    attn = attn + vec(VEC_BATT, C)                   # = bv @ Wo + bo

    # TODO(synk): training-mode dropout not implemented (identity / eval mode).
    x1 = x + attn                                    # residual

    # ---------------- feed-forward branch (pre-LN) ----------------
    h2 = _layernorm(x1, vec(VEC_LN2_G, C), vec(VEC_LN2_B, C))
    ff = jnp.dot(h2, slab_ref[R_W1:R_W1 + C, :],
                 preferred_element_type=jnp.float32) + vec(VEC_B1, F)
    ff = jnp.maximum(ff, 0.0)                        # ReLU
    ff = jnp.dot(ff, slab_ref[R_W2:R_W2 + F, :],
                 preferred_element_type=jnp.float32)  # (T, 128); cols >= C are 0
    y = x1 + ff[:, :C] + vec(VEC_B2, C)              # residual

    o_ref[...] = y.reshape(1, T, C)


def _pack_params(params):
    """Fuse / fold / pack all parameters into one lane-dense (SLAB_ROWS,128) slab."""
    (ln1_g, ln1_b, wq, bq, wk, bk, wv, bv, wo, bo,
     ln2_g, ln2_b, w1, b1, w2, b2) = params
    C, H, D = N_EMBED, N_HEADS, HEAD_DIM

    with jax.default_matmul_precision("highest"):    # exact host-side fold
        wvo = jnp.concatenate(
            [wv[:, h * D:(h + 1) * D] @ wo[h * D:(h + 1) * D, :] for h in range(H)],
            axis=1)                                  # (C, H*C)
        # softmax rows sum to 1, so the value bias folds into a constant term
        b_att = bv @ wo + bo                         # (1, C)

    def pad_c(a):
        return jnp.pad(a, ((0, 0), (0, LANES - a.shape[1])))

    slab = jnp.concatenate([
        pad_c(jnp.concatenate([wq, wk], axis=1)),    # rows R_WQK .. R_WQK+C
        pad_c(wvo),                                  # rows R_WVO .. R_WVO+C
        pad_c(w1),                                   # rows R_W1  .. R_W1+C
        pad_c(w2),                                   # rows R_W2  .. R_W2+FF_DIM
        pad_c(ln1_g), pad_c(ln1_b), pad_c(ln2_g), pad_c(ln2_b),
        pad_c(jnp.concatenate([bq, bk], axis=1)),
        pad_c(b_att), pad_c(b1), pad_c(b2),
    ], axis=0).astype(jnp.float32)
    assert slab.shape == (SLAB_ROWS, LANES)
    return slab


def transformer_block(x, params):
    """x: (B, T, C) float32; params: un-fused parameter tuple (PyTorch layout)."""
    B, T, C = x.shape
    assert (B, T, C) == (BATCH, BLOCK_SIZE, N_EMBED)
    slab = _pack_params(params)

    flops = int(
        2 * B * T * C * 2 * C                        # fused Q|K projection
        + 2 * B * T * C * N_HEADS * C                # folded V' projection
        + 2 * B * N_HEADS * T * T * HEAD_DIM         # scores
        + 2 * B * N_HEADS * T * T * C                # P @ V'
        + 2 * B * T * C * FF_DIM * 2)                # feed-forward

    return pl.pallas_call(
        transformer_block_kernel,
        out_shape=jax.ShapeDtypeStruct((B, T, C), jnp.float32),
        grid_spec=pltpu.PrefetchScalarGridSpec(
            num_scalar_prefetch=0,
            grid=(B,),                               # one step per batch element
            in_specs=[
                pl.BlockSpec((1, T, C), lambda b: (b, 0, 0)),
                # whole param slab, same block every step -> single DMA, resident
                pl.BlockSpec((SLAB_ROWS, LANES), lambda b: (0, 0)),
            ],
            out_specs=pl.BlockSpec((1, T, C), lambda b: (b, 0, 0)),
        ),
        compiler_params=pltpu.CompilerParams(
            dimension_semantics=("parallel",)),      # v7x: batch across both TCs
        cost_estimate=pl.CostEstimate(
            flops=flops,
            transcendentals=int(B * N_HEADS * T * T),
            bytes_accessed=int(4 * (2 * x.size + slab.size))),
    )(x, slab)


def make_params(key):
    C, F = N_EMBED, FF_DIM
    ks = jax.random.split(key, 16)
    s = lambda fan_in: 1.0 / jnp.sqrt(fan_in)

    ln1_g = 1.0 + 0.1 * jax.random.normal(ks[0], (1, C), jnp.float32)
    ln1_b = 0.1 * jax.random.normal(ks[1], (1, C), jnp.float32)
    ln2_g = 1.0 + 0.1 * jax.random.normal(ks[2], (1, C), jnp.float32)
    ln2_b = 0.1 * jax.random.normal(ks[3], (1, C), jnp.float32)

    wq = jax.random.normal(ks[4], (C, C), jnp.float32) * s(C)
    wk = jax.random.normal(ks[5], (C, C), jnp.float32) * s(C)
    wv = jax.random.normal(ks[6], (C, C), jnp.float32) * s(C)
    wo = jax.random.normal(ks[7], (C, C), jnp.float32) * s(C)
    bq = 0.05 * jax.random.normal(ks[8], (1, C), jnp.float32)
    bk = 0.05 * jax.random.normal(ks[9], (1, C), jnp.float32)
    bv = 0.05 * jax.random.normal(ks[10], (1, C), jnp.float32)
    bo = 0.05 * jax.random.normal(ks[11], (1, C), jnp.float32)

    w1 = jax.random.normal(ks[12], (C, F), jnp.float32) * s(C)
    b1 = 0.05 * jax.random.normal(ks[13], (1, F), jnp.float32)
    w2 = jax.random.normal(ks[14], (F, C), jnp.float32) * s(F)
    b2 = 0.05 * jax.random.normal(ks[15], (1, C), jnp.float32)

    return (ln1_g, ln1_b, wq, bq, wk, bk, wv, bv, wo, bo,
            ln2_g, ln2_b, w1, b1, w2, b2)


def reference(x, params):
    (ln1_g, ln1_b, wq, bq, wk, bk, wv, bv, wo, bo,
     ln2_g, ln2_b, w1, b1, w2, b2) = params
    B, T, C = x.shape
    H, D = N_HEADS, HEAD_DIM

    def ln(z, g, b):
        mu = jnp.mean(z, -1, keepdims=True)
        var = jnp.mean((z - mu) ** 2, -1, keepdims=True)
        return (z - mu) / jnp.sqrt(var + LN_EPS) * g[0] + b[0]

    h = ln(x, ln1_g, ln1_b)
    q = (h @ wq + bq[0]).reshape(B, T, H, D).transpose(0, 2, 1, 3)
    k = (h @ wk + bk[0]).reshape(B, T, H, D).transpose(0, 2, 1, 3)
    v = (h @ wv + bv[0]).reshape(B, T, H, D).transpose(0, 2, 1, 3)
    s = jnp.einsum("bhtd,bhsd->bhts", q, k) * D ** -0.5
    mask = jnp.tril(jnp.ones((T, T), bool))
    s = jnp.where(mask, s, NEG_INF)
    p = jax.nn.softmax(s, axis=-1)
    attn = jnp.einsum("bhts,bhsd->bhtd", p, v).transpose(0, 2, 1, 3).reshape(B, T, C)
    attn = attn @ wo + bo[0]
    x = x + attn
    h2 = ln(x, ln2_g, ln2_b)
    ff = jnp.maximum(h2 @ w1 + b1[0], 0.0) @ w2 + b2[0]
    return x + ff


if __name__ == "__main__":
    key = jax.random.PRNGKey(0)
    kx, kp = jax.random.split(key)
    x = jax.random.normal(kx, (BATCH, BLOCK_SIZE, N_EMBED), jnp.float32)
    params = make_params(kp)

    out = jax.block_until_ready(transformer_block(x, params))

    with jax.default_matmul_precision("highest"):
        ref = jax.block_until_ready(reference(x, params))

    assert out.shape == (BATCH, BLOCK_SIZE, N_EMBED)
    # exact softmax division restored -> tolerance tightened from 3e-2 to 2e-3
    # (remaining slack covers f32 MXU-pass rounding + host-side W_V@W_O fold
    #  reassociation, both << 2e-3 in practice).
    assert jnp.allclose(out, ref, atol=2e-3, rtol=2e-3), "mismatch vs reference"
    print("KERNEL_OK")
</pallas_src>

<mosaic_0001>
module attributes {stable_mosaic.version = 11 : i64} {
  func.func @transformer_block_kernel(%arg0: i32, %arg1: memref<1x8x32xf32, #tpu.memory_space<vmem>>, %arg2: memref<232x128xf32, #tpu.memory_space<vmem>>, %arg3: memref<1x8x32xf32, #tpu.memory_space<vmem>>) attributes {dimension_semantics = [#tpu.dimension_semantics<parallel>], iteration_bounds = array<i64: 2>, scalar_prefetch = 0 : i64, scratch_operands = 0 : i64, tpu.core_type = #tpu.core_type<tc>, window_params = [{transform_indices = @transform_0, window_bounds = array<i64: 1, 8, 32>}, {pipeline_mode = #tpu.pipeline_mode<synchronous>, transform_indices = @transform_1, window_bounds = array<i64: 232, 128>}, {transform_indices = @transform_2, window_bounds = array<i64: 1, 8, 32>}]} {
    %c0 = arith.constant 0 : index
    %c0_0 = arith.constant 0 : index
    %c0_1 = arith.constant 0 : index
    %0 = vector.load %arg1[%c0, %c0_0, %c0_1] : memref<1x8x32xf32, #tpu.memory_space<vmem>>, vector<1x8x32xf32>
    %1 = vector.shape_cast %0 : vector<1x8x32xf32> to vector<8x32xf32>
    %c224 = arith.constant 224 : index
    %c0_2 = arith.constant 0 : index
    %2 = vector.load %arg2[%c224, %c0_2] : memref<232x128xf32, #tpu.memory_space<vmem>>, vector<1x32xf32>
    %c225 = arith.constant 225 : index
    %c0_3 = arith.constant 0 : index
    %3 = vector.load %arg2[%c225, %c0_3] : memref<232x128xf32, #tpu.memory_space<vmem>>, vector<1x32xf32>
    %cst = arith.constant dense<0.000000e+00> : vector<8xf32>
    %4 = vector.multi_reduction <add>, %1, %cst [1] : vector<8x32xf32> to vector<8xf32>
    %5 = vector.shape_cast %4 : vector<8xf32> to vector<8x1xf32>
    %cst_4 = arith.constant 3.200000e+01 : f32
    %6 = vector.broadcast %cst_4 : f32 to vector<8x1xf32>
    %7 = arith.divf %5, %6 : vector<8x1xf32>
    %8 = vector.broadcast %7 : vector<8x1xf32> to vector<8x32xf32>
    %9 = arith.subf %1, %8 : vector<8x32xf32>
    %10 = arith.mulf %9, %9 : vector<8x32xf32>
    %cst_5 = arith.constant dense<0.000000e+00> : vector<8xf32>
    %11 = vector.multi_reduction <add>, %10, %cst_5 [1] : vector<8x32xf32> to vector<8xf32>
    %12 = vector.shape_cast %11 : vector<8xf32> to vector<8x1xf32>
    %cst_6 = arith.constant 3.200000e+01 : f32
    %13 = vector.broadcast %cst_6 : f32 to vector<8x1xf32>
    %14 = arith.divf %12, %13 : vector<8x1xf32>
    %15 = vector.broadcast %7 : vector<8x1xf32> to vector<8x32xf32>
    %16 = arith.subf %1, %15 : vector<8x32xf32>
    %cst_7 = arith.constant 9.99999974E-6 : f32
    %17 = vector.broadcast %cst_7 : f32 to vector<8x1xf32>
    %18 = arith.addf %14, %17 : vector<8x1xf32>
    %19 = math.rsqrt %18 : vector<8x1xf32>
    %20 = vector.broadcast %19 : vector<8x1xf32> to vector<8x32xf32>
    %21 = arith.mulf %16, %20 : vector<8x32xf32>
    %22 = vector.broadcast %2 : vector<1x32xf32> to vector<8x32xf32>
    %23 = arith.mulf %21, %22 : vector<8x32xf32>
    %24 = vector.broadcast %3 : vector<1x32xf32> to vector<8x32xf32>
    %25 = arith.addf %23, %24 : vector<8x32xf32>
    %c0_8 = arith.constant 0 : index
    %c0_9 = arith.constant 0 : index
    %26 = vector.load %arg2[%c0_8, %c0_9] : memref<232x128xf32, #tpu.memory_space<vmem>>, vector<32x128xf32>
    %cst_10 = arith.constant dense<0.000000e+00> : vector<8x128xf32>
    %27 = tpu.matmul %25, %26, %cst_10 {dimension_numbers = #tpu.dot_dimension_numbers<[1], [0], [0], [1], [0, 0, 1, 1], [], []>} : vector<8x32xf32>, vector<32x128xf32>, vector<8x128xf32> -> vector<8x128xf32>
    %c228 = arith.constant 228 : index
    %c0_11 = arith.constant 0 : index
    %28 = vector.load %arg2[%c228, %c0_11] : memref<232x128xf32, #tpu.memory_space<vmem>>, vector<1x128xf32>
    %29 = vector.broadcast %28 : vector<1x128xf32> to vector<8x128xf32>
    %30 = arith.addf %27, %29 : vector<8x128xf32>
    %c32 = arith.constant 32 : index
    %c0_12 = arith.constant 0 : index
    %31 = vector.load %arg2[%c32, %c0_12] : memref<232x128xf32, #tpu.memory_space<vmem>>, vector<32x128xf32>
    %cst_13 = arith.constant dense<0.000000e+00> : vector<8x128xf32>
    %32 = tpu.matmul %25, %31, %cst_13 {dimension_numbers = #tpu.dot_dimension_numbers<[1], [0], [0], [1], [0, 0, 1, 1], [], []>} : vector<8x32xf32>, vector<32x128xf32>, vector<8x128xf32> -> vector<8x128xf32>
    %33 = tpu.iota {dimensions = array<i32: 0>} : vector<8x8xi32>
    %34 = tpu.iota {dimensions = array<i32: 1>} : vector<8x8xi32>
    %35 = arith.cmpi sle, %34, %33 : vector<8x8xi32>
    %cst_14 = arith.constant 0.000000e+00 : f32
    %36 = vector.broadcast %cst_14 : f32 to vector<8x32xf32>
    %37 = vector.extract_strided_slice %30 {offsets = [0, 0], sizes = [8, 8], strides = [1, 1]} : vector<8x128xf32> to vector<8x8xf32>
    %38 = vector.extract_strided_slice %30 {offsets = [0, 32], sizes = [8, 8], strides = [1, 1]} : vector<8x128xf32> to vector<8x8xf32>
    %cst_15 = arith.constant dense<0.000000e+00> : vector<8x8xf32>
    %39 = tpu.matmul %37, %38, %cst_15 {dimension_numbers = #tpu.dot_dimension_numbers<[1], [1], [0], [0], [0, 0, 1, 0], [], []>} : vector<8x8xf32>, vector<8x8xf32>, vector<8x8xf32> -> vector<8x8xf32>
    %cst_16 = arith.constant 0.353553385 : f32
    %40 = vector.broadcast %cst_16 : f32 to vector<8x8xf32>
    %41 = arith.mulf %39, %40 : vector<8x8xf32>
    %cst_17 = arith.constant -1.000000e+30 : f32
    %42 = vector.broadcast %cst_17 : f32 to vector<8x8xf32>
    %43 = arith.select %35, %41, %42 : vector<8x8xi1>, vector<8x8xf32>
    %cst_18 = arith.constant dense<0xFF800000> : vector<8xf32>
    %44 = vector.multi_reduction <maximumf>, %43, %cst_18 [1] : vector<8x8xf32> to vector<8xf32>
    %45 = vector.shape_cast %44 : vector<8xf32> to vector<8x1xf32>
    %46 = vector.broadcast %45 : vector<8x1xf32> to vector<8x8xf32>
    %47 = arith.subf %43, %46 : vector<8x8xf32>
    %48 = math.exp %47 : vector<8x8xf32>
    %cst_19 = arith.constant dense<0.000000e+00> : vector<8xf32>
    %49 = vector.multi_reduction <add>, %48, %cst_19 [1] : vector<8x8xf32> to vector<8xf32>
    %50 = vector.shape_cast %49 : vector<8xf32> to vector<8x1xf32>
    %51 = vector.broadcast %50 : vector<8x1xf32> to vector<8x8xf32>
    %52 = arith.divf %48, %51 : vector<8x8xf32>
    %53 = vector.extract_strided_slice %32 {offsets = [0, 0], sizes = [8, 32], strides = [1, 1]} : vector<8x128xf32> to vector<8x32xf32>
    %cst_20 = arith.constant dense<0.000000e+00> : vector<8x32xf32>
    %54 = tpu.matmul %52, %53, %cst_20 {dimension_numbers = #tpu.dot_dimension_numbers<[1], [0], [0], [1], [0, 0, 1, 1], [], []>} : vector<8x8xf32>, vector<8x32xf32>, vector<8x32xf32> -> vector<8x32xf32>
    %55 = arith.addf %36, %54 : vector<8x32xf32>
    %56 = vector.extract_strided_slice %30 {offsets = [0, 8], sizes = [8, 8], strides = [1, 1]} : vector<8x128xf32> to vector<8x8xf32>
    %57 = vector.extract_strided_slice %30 {offsets = [0, 40], sizes = [8, 8], strides = [1, 1]} : vector<8x128xf32> to vector<8x8xf32>
    %cst_21 = arith.constant dense<0.000000e+00> : vector<8x8xf32>
    %58 = tpu.matmul %56, %57, %cst_21 {dimension_numbers = #tpu.dot_dimension_numbers<[1], [1], [0], [0], [0, 0, 1, 0], [], []>} : vector<8x8xf32>, vector<8x8xf32>, vector<8x8xf32> -> vector<8x8xf32>
    %cst_22 = arith.constant 0.353553385 : f32
    %59 = vector.broadcast %cst_22 : f32 to vector<8x8xf32>
    %60 = arith.mulf %58, %59 : vector<8x8xf32>
    %cst_23 = arith.constant -1.000000e+30 : f32
    %61 = vector.broadcast %cst_23 : f32 to vector<8x8xf32>
    %62 = arith.select %35, %60, %61 : vector<8x8xi1>, vector<8x8xf32>
    %cst_24 = arith.constant dense<0xFF800000> : vector<8xf32>
    %63 = vector.multi_reduction <maximumf>, %62, %cst_24 [1] : vector<8x8xf32> to vector<8xf32>
    %64 = vector.shape_cast %63 : vector<8xf32> to vector<8x1xf32>
    %65 = vector.broadcast %64 : vector<8x1xf32> to vector<8x8xf32>
    %66 = arith.subf %62, %65 : vector<8x8xf32>
    %67 = math.exp %66 : vector<8x8xf32>
    %cst_25 = arith.constant dense<0.000000e+00> : vector<8xf32>
    %68 = vector.multi_reduction <add>, %67, %cst_25 [1] : vector<8x8xf32> to vector<8xf32>
    %69 = vector.shape_cast %68 : vector<8xf32> to vector<8x1xf32>
    %70 = vector.broadcast %69 : vector<8x1xf32> to vector<8x8xf32>
    %71 = arith.divf %67, %70 : vector<8x8xf32>
    %72 = vector.extract_strided_slice %32 {offsets = [0, 32], sizes = [8, 32], strides = [1, 1]} : vector<8x128xf32> to vector<8x32xf32>
    %cst_26 = arith.constant dense<0.000000e+00> : vector<8x32xf32>
    %73 = tpu.matmul %71, %72, %cst_26 {dimension_numbers = #tpu.dot_dimension_numbers<[1], [0], [0], [1], [0, 0, 1, 1], [], []>} : vector<8x8xf32>, vector<8x32xf32>, vector<8x32xf32> -> vector<8x32xf32>
    %74 = arith.addf %55, %73 : vector<8x32xf32>
    %75 = vector.extract_strided_slice %30 {offsets = [0, 16], sizes = [8, 8], strides = [1, 1]} : vector<8x128xf32> to vector<8x8xf32>
    %76 = vector.extract_strided_slice %30 {offsets = [0, 48], sizes = [8, 8], strides = [1, 1]} : vector<8x128xf32> to vector<8x8xf32>
    %cst_27 = arith.constant dense<0.000000e+00> : vector<8x8xf32>
    %77 = tpu.matmul %75, %76, %cst_27 {dimension_numbers = #tpu.dot_dimension_numbers<[1], [1], [0], [0], [0, 0, 1, 0], [], []>} : vector<8x8xf32>, vector<8x8xf32>, vector<8x8xf32> -> vector<8x8xf32>
    %cst_28 = arith.constant 0.353553385 : f32
    %78 = vector.broadcast %cst_28 : f32 to vector<8x8xf32>
    %79 = arith.mulf %77, %78 : vector<8x8xf32>
    %cst_29 = arith.constant -1.000000e+30 : f32
    %80 = vector.broadcast %cst_29 : f32 to vector<8x8xf32>
    %81 = arith.select %35, %79, %80 : vector<8x8xi1>, vector<8x8xf32>
    %cst_30 = arith.constant dense<0xFF800000> : vector<8xf32>
    %82 = vector.multi_reduction <maximumf>, %81, %cst_30 [1] : vector<8x8xf32> to vector<8xf32>
    %83 = vector.shape_cast %82 : vector<8xf32> to vector<8x1xf32>
    %84 = vector.broadcast %83 : vector<8x1xf32> to vector<8x8xf32>
    %85 = arith.subf %81, %84 : vector<8x8xf32>
    %86 = math.exp %85 : vector<8x8xf32>
    %cst_31 = arith.constant dense<0.000000e+00> : vector<8xf32>
    %87 = vector.multi_reduction <add>, %86, %cst_31 [1] : vector<8x8xf32> to vector<8xf32>
    %88 = vector.shape_cast %87 : vector<8xf32> to vector<8x1xf32>
    %89 = vector.broadcast %88 : vector<8x1xf32> to vector<8x8xf32>
    %90 = arith.divf %86, %89 : vector<8x8xf32>
    %91 = vector.extract_strided_slice %32 {offsets = [0, 64], sizes = [8, 32], strides = [1, 1]} : vector<8x128xf32> to vector<8x32xf32>
    %cst_32 = arith.constant dense<0.000000e+00> : vector<8x32xf32>
    %92 = tpu.matmul %90, %91, %cst_32 {dimension_numbers = #tpu.dot_dimension_numbers<[1], [0], [0], [1], [0, 0, 1, 1], [], []>} : vector<8x8xf32>, vector<8x32xf32>, vector<8x32xf32> -> vector<8x32xf32>
    %93 = arith.addf %74, %92 : vector<8x32xf32>
    %94 = vector.extract_strided_slice %30 {offsets = [0, 24], sizes = [8, 8], strides = [1, 1]} : vector<8x128xf32> to vector<8x8xf32>
    %95 = vector.extract_strided_slice %30 {offsets = [0, 56], sizes = [8, 8], strides = [1, 1]} : vector<8x128xf32> to vector<8x8xf32>
    %cst_33 = arith.constant dense<0.000000e+00> : vector<8x8xf32>
    %96 = tpu.matmul %94, %95, %cst_33 {dimension_numbers = #tpu.dot_dimension_numbers<[1], [1], [0], [0], [0, 0, 1, 0], [], []>} : vector<8x8xf32>, vector<8x8xf32>, vector<8x8xf32> -> vector<8x8xf32>
    %cst_34 = arith.constant 0.353553385 : f32
    %97 = vector.broadcast %cst_34 : f32 to vector<8x8xf32>
    %98 = arith.mulf %96, %97 : vector<8x8xf32>
    %cst_35 = arith.constant -1.000000e+30 : f32
    %99 = vector.broadcast %cst_35 : f32 to vector<8x8xf32>
    %100 = arith.select %35, %98, %99 : vector<8x8xi1>, vector<8x8xf32>
    %cst_36 = arith.constant dense<0xFF800000> : vector<8xf32>
    %101 = vector.multi_reduction <maximumf>, %100, %cst_36 [1] : vector<8x8xf32> to vector<8xf32>
    %102 = vector.shape_cast %101 : vector<8xf32> to vector<8x1xf32>
    %103 = vector.broadcast %102 : vector<8x1xf32> to vector<8x8xf32>
    %104 = arith.subf %100, %103 : vector<8x8xf32>
    %105 = math.exp %104 : vector<8x8xf32>
    %cst_37 = arith.constant dense<0.000000e+00> : vector<8xf32>
    %106 = vector.multi_reduction <add>, %105, %cst_37 [1] : vector<8x8xf32> to vector<8xf32>
    %107 = vector.shape_cast %106 : vector<8xf32> to vector<8x1xf32>
    %108 = vector.broadcast %107 : vector<8x1xf32> to vector<8x8xf32>
    %109 = arith.divf %105, %108 : vector<8x8xf32>
    %110 = vector.extract_strided_slice %32 {offsets = [0, 96], sizes = [8, 32], strides = [1, 1]} : vector<8x128xf32> to vector<8x32xf32>
    %cst_38 = arith.constant dense<0.000000e+00> : vector<8x32xf32>
    %111 = tpu.matmul %109, %110, %cst_38 {dimension_numbers = #tpu.dot_dimension_numbers<[1], [0], [0], [1], [0, 0, 1, 1], [], []>} : vector<8x8xf32>, vector<8x32xf32>, vector<8x32xf32> -> vector<8x32xf32>
    %112 = arith.addf %93, %111 : vector<8x32xf32>
    %c229 = arith.constant 229 : index
    %c0_39 = arith.constant 0 : index
    %113 = vector.load %arg2[%c229, %c0_39] : memref<232x128xf32, #tpu.memory_space<vmem>>, vector<1x32xf32>
    %114 = vector.broadcast %113 : vector<1x32xf32> to vector<8x32xf32>
    %115 = arith.addf %112, %114 : vector<8x32xf32>
    %116 = arith.addf %1, %115 : vector<8x32xf32>
    %c226 = arith.constant 226 : index
    %c0_40 = arith.constant 0 : index
    %117 = vector.load %arg2[%c226, %c0_40] : memref<232x128xf32, #tpu.memory_space<vmem>>, vector<1x32xf32>
    %c227 = arith.constant 227 : index
    %c0_41 = arith.constant 0 : index
    %118 = vector.load %arg2[%c227, %c0_41] : memref<232x128xf32, #tpu.memory_space<vmem>>, vector<1x32xf32>
    %cst_42 = arith.constant dense<0.000000e+00> : vector<8xf32>
    %119 = vector.multi_reduction <add>, %116, %cst_42 [1] : vector<8x32xf32> to vector<8xf32>
    %120 = vector.shape_cast %119 : vector<8xf32> to vector<8x1xf32>
    %cst_43 = arith.constant 3.200000e+01 : f32
    %121 = vector.broadcast %cst_43 : f32 to vector<8x1xf32>
    %122 = arith.divf %120, %121 : vector<8x1xf32>
    %123 = vector.broadcast %122 : vector<8x1xf32> to vector<8x32xf32>
    %124 = arith.subf %116, %123 : vector<8x32xf32>
    %125 = arith.mulf %124, %124 : vector<8x32xf32>
    %cst_44 = arith.constant dense<0.000000e+00> : vector<8xf32>
    %126 = vector.multi_reduction <add>, %125, %cst_44 [1] : vector<8x32xf32> to vector<8xf32>
    %127 = vector.shape_cast %126 : vector<8xf32> to vector<8x1xf32>
    %cst_45 = arith.constant 3.200000e+01 : f32
    %128 = vector.broadcast %cst_45 : f32 to vector<8x1xf32>
    %129 = arith.divf %127, %128 : vector<8x1xf32>
    %130 = vector.broadcast %122 : vector<8x1xf32> to vector<8x32xf32>
    %131 = arith.subf %116, %130 : vector<8x32xf32>
    %cst_46 = arith.constant 9.99999974E-6 : f32
    %132 = vector.broadcast %cst_46 : f32 to vector<8x1xf32>
    %133 = arith.addf %129, %132 : vector<8x1xf32>
    %134 = math.rsqrt %133 : vector<8x1xf32>
    %135 = vector.broadcast %134 : vector<8x1xf32> to vector<8x32xf32>
    %136 = arith.mulf %131, %135 : vector<8x32xf32>
    %137 = vector.broadcast %117 : vector<1x32xf32> to vector<8x32xf32>
    %138 = arith.mulf %136, %137 : vector<8x32xf32>
    %139 = vector.broadcast %118 : vector<1x32xf32> to vector<8x32xf32>
    %140 = arith.addf %138, %139 : vector<8x32xf32>
    %c64 = arith.constant 64 : index
    %c0_47 = arith.constant 0 : index
    %141 = vector.load %arg2[%c64, %c0_47] : memref<232x128xf32, #tpu.memory_space<vmem>>, vector<32x128xf32>
    %cst_48 = arith.constant dense<0.000000e+00> : vector<8x128xf32>
    %142 = tpu.matmul %140, %141, %cst_48 {dimension_numbers = #tpu.dot_dimension_numbers<[1], [0], [0], [1], [0, 0, 1, 1], [], []>} : vector<8x32xf32>, vector<32x128xf32>, vector<8x128xf32> -> vector<8x128xf32>
    %c230 = arith.constant 230 : index
    %c0_49 = arith.constant 0 : index
    %143 = vector.load %arg2[%c230, %c0_49] : memref<232x128xf32, #tpu.memory_space<vmem>>, vector<1x128xf32>
    %144 = vector.broadcast %143 : vector<1x128xf32> to vector<8x128xf32>
    %145 = arith.addf %142, %144 : vector<8x128xf32>
    %cst_50 = arith.constant 0.000000e+00 : f32
    %146 = vector.broadcast %cst_50 : f32 to vector<8x128xf32>
    %147 = arith.maximumf %145, %146 : vector<8x128xf32>
    %c96 = arith.constant 96 : index
    %c0_51 = arith.constant 0 : index
    %148 = vector.load %arg2[%c96, %c0_51] : memref<232x128xf32, #tpu.memory_space<vmem>>, vector<128x128xf32>
    %cst_52 = arith.constant dense<0.000000e+00> : vector<8x128xf32>
    %149 = tpu.matmul %147, %148, %cst_52 {dimension_numbers = #tpu.dot_dimension_numbers<[1], [0], [0], [1], [0, 0, 1, 1], [], []>} : vector<8x128xf32>, vector<128x128xf32>, vector<8x128xf32> -> vector<8x128xf32>
    %150 = vector.extract_strided_slice %149 {offsets = [0, 0], sizes = [8, 32], strides = [1, 1]} : vector<8x128xf32> to vector<8x32xf32>
    %151 = arith.addf %116, %150 : vector<8x32xf32>
    %c231 = arith.constant 231 : index
    %c0_53 = arith.constant 0 : index
    %152 = vector.load %arg2[%c231, %c0_53] : memref<232x128xf32, #tpu.memory_space<vmem>>, vector<1x32xf32>
    %153 = vector.broadcast %152 : vector<1x32xf32> to vector<8x32xf32>
    %154 = arith.addf %151, %153 : vector<8x32xf32>
    %155 = vector.shape_cast %154 : vector<8x32xf32> to vector<1x8x32xf32>
    %c0_54 = arith.constant 0 : index
    %c0_55 = arith.constant 0 : index
    %c0_56 = arith.constant 0 : index
    %156 = vector.load %arg3[%c0_54, %c0_55, %c0_56] : memref<1x8x32xf32, #tpu.memory_space<vmem>>, vector<1x8x32xf32>
    tpu.vector_store %arg3[%c0_54, %c0_55, %c0_56], %155 {strides = array<i32>} : memref<1x8x32xf32, #tpu.memory_space<vmem>>, vector<1x8x32xf32>,
    return
  }
  func.func @transform_0(%arg0: i32) -> (i32, i32, i32) {
    %c0_i32 = arith.constant 0 : i32
    %c0_i32_0 = arith.constant 0 : i32
    %c0_i32_1 = arith.constant 0 : i32
    return %arg0, %c0_i32, %c0_i32_0 : i32, i32, i32
  }
  func.func @transform_1(%arg0: i32) -> (i32, i32) {
    %c0_i32 = arith.constant 0 : i32
    %c0_i32_0 = arith.constant 0 : i32
    %c0_i32_1 = arith.constant 0 : i32
    return %c0_i32, %c0_i32_0 : i32, i32
  }
  func.func @transform_2(%arg0: i32) -> (i32, i32, i32) {
    %c0_i32 = arith.constant 0 : i32
    %c0_i32_0 = arith.constant 0 : i32
    %c0_i32_1 = arith.constant 0 : i32
    return %arg0, %c0_i32, %c0_i32_0 : i32, i32, i32
  }
}

</mosaic_0001>

<llo_original>
// kernel: tpu_custom_call.1
$region0: #{tpu_custom_call.1}
  #allocation0 [shape = 'u32[]', space=smem, size = 0x4, offset = 0x4, fixed_abs, tag = 'smem constant byte address 0x4 - core index']
  #allocation1 [shape = 'u32[144,128]{1,0:T(1,128)}', space=vmem, size = 0x12000, scoped, tag = 'internal scratch']
  %s0 = inlined_call_operand.hbm [shape: f32[2,8,32], index: 0, kind: input, shape index: {}]
  %s1 = inlined_call_operand.hbm [shape: f32[232,128], index: 1, kind: input, shape index: {}]
  %s2 = inlined_call_operand.hbm [shape: f32[2,8,32], index: 2, kind: output, shape index: {}]
  %s3 = sld [smem:[#allocation0]]
  $region49: #{tpu_custom_call.1} parent=0
    _
  %s5 = ssub.s32 1, %s3
  %s6 = scalar_select 0, %s5, %s3
  $region1: #{tpu_custom_call.1} parent=0
    #allocation2 [shape = 'u8[8192]{0}', space=vmem, size = 0x2000, scoped, tag = 'input window, operand 0']
    #allocation3 [shape = 's32[2]{0}', space=sflag, size = 0x8, scoped, tag = 'scoped memory for tpu_custom_call.1']
    #allocation4 [shape = 's32[2]{0}', space=sflag, size = 0x8, scoped, tag = 'scoped memory for tpu_custom_call.1']
    #allocation5 [shape = 'u8[118784]{0}', space=vmem, size = 0x1d000, scoped, tag = 'input window, operand 1, single buffered']
    #allocation6 [shape = 's32[1]{0}', space=sflag, size = 0x4, scoped, tag = 'scoped memory for tpu_custom_call.1']
    #allocation7 [shape = 'u8[8192]{0}', space=vmem, size = 0x2000, scoped, tag = 'output window, operand 0']
    %7 = vsyncpa [#allocation3], 0
    %s8 = scalar_lea.sflag [#allocation3], 1
    %9 = vsyncpa %s8, 0
    %10 = vsyncpa [#allocation6], 0
    %11 = vsyncpa [#allocation4], 0
    %s12 = scalar_lea.sflag [#allocation4], 1
    %13 = vsyncpa %s12, 0
    loop: start=0, step=1, limit=4
    $region2: #{tpu_custom_call.1} parent=1 // loop_pre_header
      _
    $region3: #{tpu_custom_call.1} parent=1 // loop_header
      %s15 = sphi 0, %s19
      %p16 = scmp.ge.s32.totalorder %s15, 4
      %s25 = sphi 0, %s27
      %s28 = sphi 0, %s25
      %s29 = sphi 0, %s28
      %s45 = sphi 0, %s29
      %s49 = sphi 0, %s49
      %s51 = sphi 0, %s49
      %s52 = sphi 0, %s51
      %s66 = sphi 0, %s52
      %s72 = sphi 0, %s74
      %s75 = sphi 0, %s72
      %s76 = sphi 0, %s75
      %s92 = sphi 0, %s76
    $region4: #{tpu_custom_call.1} parent=1 // loop_header_branch
      %18 = sbr.rel (%p16) target = $region8
    $region5: #{tpu_custom_call.1} parent=1 // loop_body
      %s20 = ssub.s32 %s15, 1
      %s21 = ssub.s32 %s15, 2
      %s22 = sadd.s32 %s15, 1
      %s23 = ssub.s32 %s15, %s22
      %p24 = scmp.eq.s32.totalorder %s23, 0
      %s26 = sadd.s32 %s25, 1
      %s27 = scalar_select %p24, %s25, %s26
      %p30 = pneg %p24
      %p31 = scmp.eq.s32.totalorder %s15, 1
      %p32 = por %p30, %p31
      %p33 = scmp.ne.s32.totalorder %s25, %s28
      %p34 = scmp.eq.s32.totalorder %s15, 0
      %p35 = por %p33, %p34
      %p36 = scmp.ne.s32.totalorder %s25, %s28
      %p37 = scmp.eq.s32.totalorder %s20, 1
      %p38 = por %p36, %p37
      %p39 = scmp.ne.s32.totalorder %s28, %s29
      %p40 = scmp.eq.s32.totalorder %s20, 0
      %p41 = por %p39, %p40
      %p42 = scmp.ne.s32.totalorder %s28, %s29
      %p43 = scmp.eq.s32.totalorder %s21, 1
      %p44 = por %p42, %p43
      %p46 = scmp.ne.s32.totalorder %s29, %s45
      %p47 = scmp.eq.s32.totalorder %s21, 0
      %p48 = por %p46, %p47
      %s50 = sadd.s32 %s49, 1
      %p53 = scmp.eq.s32.totalorder %s15, 1
      %p54 = scmp.ne.s32.totalorder %s49, %s51
      %p55 = scmp.eq.s32.totalorder %s15, 0
      %p56 = por %p54, %p55
      %p57 = scmp.ne.s32.totalorder %s49, %s51
      %p58 = scmp.eq.s32.totalorder %s20, 1
      %p59 = por %p57, %p58
      %p60 = scmp.ne.s32.totalorder %s51, %s52
      %p61 = scmp.eq.s32.totalorder %s20, 0
      %p62 = por %p60, %p61
      %p63 = scmp.ne.s32.totalorder %s51, %s52
      %p64 = scmp.eq.s32.totalorder %s21, 1
      %p65 = por %p63, %p64
      %p67 = scmp.ne.s32.totalorder %s52, %s66
      %p68 = scmp.eq.s32.totalorder %s21, 0
      %p69 = por %p67, %p68
      %s70 = ssub.s32 %s15, %s22
      %p71 = scmp.eq.s32.totalorder %s70, 0
      %s73 = sadd.s32 %s72, 1
      %s74 = scalar_select %p71, %s72, %s73
      %p77 = pneg %p71
      %p78 = scmp.eq.s32.totalorder %s15, 1
      %p79 = por %p77, %p78
      %p80 = scmp.ne.s32.totalorder %s72, %s75
      %p81 = scmp.eq.s32.totalorder %s15, 0
      %p82 = por %p80, %p81
      %p83 = scmp.ne.s32.totalorder %s72, %s75
      %p84 = scmp.eq.s32.totalorder %s20, 1
      %p85 = por %p83, %p84
      %p86 = scmp.ne.s32.totalorder %s75, %s76
      %p87 = scmp.eq.s32.totalorder %s20, 0
      %p88 = por %p86, %p87
      %p89 = scmp.ne.s32.totalorder %s75, %s76
      %p90 = scmp.eq.s32.totalorder %s21, 1
      %p91 = por %p89, %p90
      %p93 = scmp.ne.s32.totalorder %s76, %s92
      %p94 = scmp.eq.s32.totalorder %s21, 0
      %p95 = por %p93, %p94
      %p96 = scmp.le.s32.totalorder 1, %s15
      %p97 = scmp.lt.s32.totalorder %s15, 3
      %p98 = pnand %p96, %p97
      %p99 = pneg %p98
      // Predicated region
      $region9: #{tpu_custom_call.1} parent=5 // pred_check
        _
      $region10: #{tpu_custom_call.1} parent=5 // pred_check_branch
        %101 = sbr.rel (%p98) target = $region12
      $region11: #{tpu_custom_call.1} parent=5 // pred_region
        %s102 = ssub.s32 %s15, 1
        // Predicated region
        $region13: #{tpu_custom_call.1} parent=11 // pred_check
          %p103 = pneg %p62
        $region14: #{tpu_custom_call.1} parent=11 // pred_check_branch
          %105 = sbr.rel (%p103) target = $region16
        $region15: #{tpu_custom_call.1} parent=11 // pred_region
          %s107 = ssub.s32 3712, 3712
          %108 = vsyncadd [#allocation6], %s107
          %s109 = sshll.u32 [#allocation5], 4
          %s110 = int_to_ptr.vmem [resolvable:$true] %s109
          %115 = dma.hbm_to_vmem [thread:$0]  %s1, 3712, %s110, [#allocation6], 128, 128, 8
        $region16: #{tpu_custom_call.1} parent=11 // pred_fallthru
          _
      $region12: #{tpu_custom_call.1} parent=5 // pred_fallthru
        _
      %p116 = scmp.lt.s32.totalorder %s15, 2
      // Predicated region
      $region17: #{tpu_custom_call.1} parent=5 // pred_check
        %p117 = pneg %p116
      $region18: #{tpu_custom_call.1} parent=5 // pred_check_branch
        %119 = sbr.rel (%p117) target = $region20
      $region19: #{tpu_custom_call.1} parent=5 // pred_region
        // Predicated region
        $region21: #{tpu_custom_call.1} parent=19 // pred_check
          %p120 = pneg %p35
        $region22: #{tpu_custom_call.1} parent=19 // pred_check_branch
          %122 = sbr.rel (%p120) target = $region24
        $region23: #{tpu_custom_call.1} parent=19 // pred_region
          %s123 = sand.u32 %s25, 1
          %s124 = scalar_lea.sflag [#allocation3], %s123
          %s125 = sand.u32 %s25, 1
          %s126 = smul.addr %s125, 8
          %s127 = scalar_lea.vmem [#allocation2], %s126
          %s129 = ssub.s32 128, 128
          %130 = vsyncadd %s124, %s129
          %s131 = smul.addr %s15, 128
          %s132 = scalar_lea.hbm %s0, %s131
          %s134 = sshll.u32 %s127, 4
          %s135 = int_to_ptr.vmem [resolvable:$true] %s134
          %137 = dma.hbm_to_vmem [thread:$0]  %s132, 128, %s135, %s124
        $region24: #{tpu_custom_call.1} parent=19 // pred_fallthru
          _
      $region20: #{tpu_custom_call.1} parent=5 // pred_fallthru
        _
      %p138 = scmp.le.s32.totalorder 1, %s15
      %p139 = scmp.lt.s32.totalorder %s15, 3
      %p140 = pnand %p138, %p139
      %p141 = pneg %p140
      // Predicated region
      $region25: #{tpu_custom_call.1} parent=5 // pred_check
        _
      $region26: #{tpu_custom_call.1} parent=5 // pred_check_branch
        %143 = sbr.rel (%p140) target = $region28
      $region27: #{tpu_custom_call.1} parent=5 // pred_region
        %s144 = ssub.s32 %s15, 1
        %s145 = sand.u32 %s28, 1
        %s146 = scalar_lea.sflag [#allocation3], %s145
        %s147 = sand.u32 %s28, 1
        %s148 = smul.addr %s147, 8
        %s149 = scalar_lea.vmem [#allocation2], %s148
        // Predicated region
        $region29: #{tpu_custom_call.1} parent=27 // pred_check
          %p150 = pneg %p41
        $region30: #{tpu_custom_call.1} parent=27 // pred_check_branch
          %152 = sbr.rel (%p150) target = $region32
        $region31: #{tpu_custom_call.1} parent=27 // pred_region
          %153 = dma.done %s146, 128
        $region32: #{tpu_custom_call.1} parent=27 // pred_fallthru
          _
        // Predicated region
        $region33: #{tpu_custom_call.1} parent=27 // pred_check
          %p154 = pneg %p62
        $region34: #{tpu_custom_call.1} parent=27 // pred_check_branch
          %156 = sbr.rel (%p154) target = $region36
        $region35: #{tpu_custom_call.1} parent=27 // pred_region
          %157 = dma.done [#allocation6], 3712
        $region36: #{tpu_custom_call.1} parent=27 // pred_fallthru
          _
        %s158 = sand.u32 %s28, 1
        %s159 = scalar_lea.sflag [#allocation3], %s158
        %s160 = sand.u32 %s28, 1
        %s161 = smul.addr %s160, 8
        %s162 = scalar_lea.vmem [#allocation2], %s161
        %p163 = pneg %p41
        %p164 = pneg %p38
        %p165 = pneg %p62
        %p166 = pneg %p59
        %p167 = pneg %p88
        %p168 = pneg %p85
        %s169 = sand.u32 %s75, 1
        %s170 = scalar_lea.sflag [#allocation4], %s169
        %s171 = sand.u32 %s75, 1
        %s172 = smul.addr %s171, 8
        %s173 = scalar_lea.vmem [#allocation7], %s172
        %v174 = vld [vmem:[%s149] sm:$0xff]
        %v175 = vld [vmem:[#allocation5 + $0xe0] sm:$0x1]
        %v176 = vld [vmem:[#allocation5 + $0xe1] sm:$0x1]
        %vm177 = vcmask 261120
        %v178 = vsel %vm177, %v174, 0.0
        %179 = vadd.xlane.f32.xlu0 %v178
        %v180 = vpop.xlane.xlu0 %179
        %v181 = vrcp.pop 32.0
        %v182 = vmul.f32 %v180, %v181
        %v183 = vsub.f32 %v174, %v182
        %v184 = vmul.f32 %v183, %v183
        %v185 = vsel %vm177, %v184, 0.0
        %186 = vadd.xlane.f32.xlu0 %v185
        %v187 = vpop.xlane.xlu0 %186
        %v188 = vmul.f32 %v187, %v181
        %v189 = vadd.f32 %v188, 1e-05
        %v190 = vrsqrt.pop %v189
        %v191 = vmul.f32 %v183, %v190
        %v192 = vlaneseq
        %v193 = vshrl.u32 %v192, 7
        %v194 = vsub.s32 0, %v193
        %v195 = vrot.slane %v175, %v194
        %v196 = vmul.f32 %v191, %v195
        %v197 = vlaneseq
        %v198 = vshrl.u32 %v197, 7
        %v199 = vsub.s32 0, %v198
        %v200 = vrot.slane %v176, %v199
        %v201 = vadd.f32 %v196, %v200
        %v202 = vld [vmem:[#allocation5] sm:$0xff]
        %v203 = vld [vmem:[#allocation5 + $0x8] sm:$0xff]
        %v204 = vld [vmem:[#allocation5 + $0x10] sm:$0xff]
        %v205 = vld [vmem:[#allocation5 + $0x18] sm:$0xff]
        %v206 = vld [vmem:[#allocation5 + $0xe4] sm:$0x1]
        %v207 = vlaneseq
        %v208 = vshrl.u32 %v207, 7
        %v209 = vsub.s32 0, %v208
        %v210 = vrot.slane %v206, %v209
        %v212 = vsel %vm177, %v201, 0
        %214 = vmatprep.subr.mxu0 0.0
        %215 = vmatpush1.msra.mxu0 0.0
        %216 = vmatprep.subr.mxu0 0.0
        %217 = vmatpush1.msra.mxu0 0.0
        %218 = vmatprep.subr.mxu0 0.0
        %219 = vmatpush1.msra.mxu0 0.0
        %220 = vmatprep.subr.mxu0 0.0
        %221 = vmatpush1.msra.mxu0 0.0
        %222 = vmatprep.subr.mxu0 0.0
        %223 = vmatpush1.msra.mxu0 0.0
        %224 = vmatprep.subr.mxu0 0.0
        %225 = vmatpush1.msra.mxu0 0.0
        %226 = vmatprep.subr.mxu0 0.0
        %227 = vmatpush1.msra.mxu0 0.0
        %228 = vmatprep.subr.mxu0 0.0
        %229 = vmatpush1.msra.mxu0 0.0
        %230 = vmatprep.subr.mxu0 0.0
        %231 = vmatpush1.msra.mxu0 0.0
        %232 = vmatprep.subr.mxu0 0.0
        %233 = vmatpush1.msra.mxu0 0.0
        %234 = vmatprep.subr.mxu0 0.0
        %235 = vmatpush1.msra.mxu0 0.0
        %236 = vmatprep.subr.mxu0 0.0
        %237 = vmatpush1.msra.mxu0 0.0
        %238 = vmatprep.subr.mxu0 0.0
        %239 = vmatpush1.msra.mxu0 %v205
        %240 = vmatprep.subr.mxu0 0.0
        %241 = vmatpush1.msra.mxu0 %v204
        %242 = vmatprep.subr.mxu0 0.0
        %243 = vmatpush1.msra.mxu0 %v203
        %244 = vmatprep.subr.mxu0 0.0
        %245 = vmatpush1.msra.mxu0 %v202
        %246 = vmatprep.subr.mxu0 0.0
        %247 = vmatpush2.msra.mxu0 0.0
        %248 = vmatprep.subr.mxu0 0.0
        %249 = vmatpush2.msra.mxu0 0.0
        %250 = vmatprep.subr.mxu0 0.0
        %251 = vmatpush2.msra.mxu0 0.0
        %252 = vmatprep.subr.mxu0 0.0
        %253 = vmatpush2.msra.mxu0 0.0
        %254 = vmatprep.subr.mxu0 0.0
        %255 = vmatpush2.msra.mxu0 0.0
        %256 = vmatprep.subr.mxu0 0.0
        %257 = vmatpush2.msra.mxu0 0.0
        %258 = vmatprep.subr.mxu0 0.0
        %259 = vmatpush2.msra.mxu0 0.0
        %260 = vmatprep.subr.mxu0 0.0
        %261 = vmatpush2.msra.mxu0 0.0
        %262 = vmatprep.subr.mxu0 0.0
        %263 = vmatpush2.msra.mxu0 0.0
        %264 = vmatprep.subr.mxu0 0.0
        %265 = vmatpush2.msra.mxu0 0.0
        %266 = vmatprep.subr.mxu0 0.0
        %267 = vmatpush2.msra.mxu0 0.0
        %268 = vmatprep.subr.mxu0 0.0
        %269 = vmatpush2.msra.mxu0 0.0
        %270 = vmatprep.subr.mxu0 0.0
        %271 = vmatpush2.msra.mxu0 0.0
        %272 = vmatprep.subr.mxu0 0.0
        %273 = vmatpush2.msra.mxu0 0.0
        %274 = vmatprep.subr.mxu0 0.0
        %275 = vmatpush2.msra.mxu0 0.0
        %276 = vmatprep.subr.mxu0 0.0
        %277 = vmatpush2.msra.mxu0 0.0
        %278 = vmatprep.mubr.f32.mxu0 0.0
        %279 = vmatmul.mubr.f32.gmra.mxu0 %v212
        %v280 = vpop.f32.mrf.mxu0
        %v281 = vadd.f32 %v210, %v280
        %v282 = vpop.f32.mrf.mxu0
        %283 = vdwg.mxu0
        %v284 = vld [vmem:[#allocation5 + $0x20] sm:$0xff]
        %v285 = vld [vmem:[#allocation5 + $0x28] sm:$0xff]
        %v286 = vld [vmem:[#allocation5 + $0x30] sm:$0xff]
        %v287 = vld [vmem:[#allocation5 + $0x38] sm:$0xff]
        %288 = vmatprep.subr.mxu0 0.0
        %289 = vmatpush1.msra.mxu0 0.0
        %290 = vmatprep.subr.mxu0 0.0
        %291 = vmatpush1.msra.mxu0 0.0
        %292 = vmatprep.subr.mxu0 0.0
        %293 = vmatpush1.msra.mxu0 0.0
        %294 = vmatprep.subr.mxu0 0.0
        %295 = vmatpush1.msra.mxu0 0.0
        %296 = vmatprep.subr.mxu0 0.0
        %297 = vmatpush1.msra.mxu0 0.0
        %298 = vmatprep.subr.mxu0 0.0
        %299 = vmatpush1.msra.mxu0 0.0
        %300 = vmatprep.subr.mxu0 0.0
        %301 = vmatpush1.msra.mxu0 0.0
        %302 = vmatprep.subr.mxu0 0.0
        %303 = vmatpush1.msra.mxu0 0.0
        %304 = vmatprep.subr.mxu0 0.0
        %305 = vmatpush1.msra.mxu0 0.0
        %306 = vmatprep.subr.mxu0 0.0
        %307 = vmatpush1.msra.mxu0 0.0
        %308 = vmatprep.subr.mxu0 0.0
        %309 = vmatpush1.msra.mxu0 0.0
        %310 = vmatprep.subr.mxu0 0.0
        %311 = vmatpush1.msra.mxu0 0.0
        %312 = vmatprep.subr.mxu0 0.0
        %313 = vmatpush1.msra.mxu0 %v287
        %314 = vmatprep.subr.mxu0 0.0
        %315 = vmatpush1.msra.mxu0 %v286
        %316 = vmatprep.subr.mxu0 0.0
        %317 = vmatpush1.msra.mxu0 %v285
        %318 = vmatprep.subr.mxu0 0.0
        %319 = vmatpush1.msra.mxu0 %v284
        %320 = vmatprep.subr.mxu0 0.0
        %321 = vmatpush2.msra.mxu0 0.0
        %322 = vmatprep.subr.mxu0 0.0
        %323 = vmatpush2.msra.mxu0 0.0
        %324 = vmatprep.subr.mxu0 0.0
        %325 = vmatpush2.msra.mxu0 0.0
        %326 = vmatprep.subr.mxu0 0.0
        %327 = vmatpush2.msra.mxu0 0.0
        %328 = vmatprep.subr.mxu0 0.0
        %329 = vmatpush2.msra.mxu0 0.0
        %330 = vmatprep.subr.mxu0 0.0
        %331 = vmatpush2.msra.mxu0 0.0
        %332 = vmatprep.subr.mxu0 0.0
        %333 = vmatpush2.msra.mxu0 0.0
        %334 = vmatprep.subr.mxu0 0.0
        %335 = vmatpush2.msra.mxu0 0.0
        %336 = vmatprep.subr.mxu0 0.0
        %337 = vmatpush2.msra.mxu0 0.0
        %338 = vmatprep.subr.mxu0 0.0
        %339 = vmatpush2.msra.mxu0 0.0
        %340 = vmatprep.subr.mxu0 0.0
        %341 = vmatpush2.msra.mxu0 0.0
        %342 = vmatprep.subr.mxu0 0.0
        %343 = vmatpush2.msra.mxu0 0.0
        %344 = vmatprep.subr.mxu0 0.0
        %345 = vmatpush2.msra.mxu0 0.0
        %346 = vmatprep.subr.mxu0 0.0
        %347 = vmatpush2.msra.mxu0 0.0
        %348 = vmatprep.subr.mxu0 0.0
        %349 = vmatpush2.msra.mxu0 0.0
        %350 = vmatprep.subr.mxu0 0.0
        %351 = vmatpush2.msra.mxu0 0.0
        %352 = vmatprep.mubr.f32.mxu0 0.0
        %353 = vmatmul.mubr.f32.gmra.mxu0 %v212
        %v354 = vpop.f32.mrf.mxu0
        %v355 = vadd.f32 0.0, %v354
        %v356 = vpop.f32.mrf.mxu0
        %357 = vdwg.mxu0
        %v358 = vlaneseq
        %v359 = vshrl.u32 %v358, 7
        %v360 = vlaneseq
        %v361 = vand.u32 %v360, 127
        %vm362 = vcmp.le.s32.totalorder %v361, %v359
        %364 = vrot.lane.b32.xlu0 %v281, 96
        %v365 = vpop.permute.xlu0 %364
        %vm366 = vcmask 64512
        %v367 = vsel %vm366, %v281, 0
        %v369 = vsel %vm366, %v365, 0
        %371 = vmatprep.subr.mxu0 0.0
        %372 = vmatpush1.xpose.msra.mxu0 0.0
        %373 = vmatprep.subr.mxu0 0.0
        %374 = vmatpush1.xpose.msra.mxu0 0.0
        %375 = vmatprep.subr.mxu0 0.0
        %376 = vmatpush1.xpose.msra.mxu0 0.0
        %377 = vmatprep.subr.mxu0 0.0
        %378 = vmatpush1.xpose.msra.mxu0 0.0
        %379 = vmatprep.subr.mxu0 0.0
        %380 = vmatpush1.xpose.msra.mxu0 0.0
        %381 = vmatprep.subr.mxu0 0.0
        %382 = vmatpush1.xpose.msra.mxu0 0.0
        %383 = vmatprep.subr.mxu0 0.0
        %384 = vmatpush1.xpose.msra.mxu0 0.0
        %385 = vmatprep.subr.mxu0 0.0
        %386 = vmatpush1.xpose.msra.mxu0 0.0
        %387 = vmatprep.subr.mxu0 0.0
        %388 = vmatpush1.xpose.msra.mxu0 0.0
        %389 = vmatprep.subr.mxu0 0.0
        %390 = vmatpush1.xpose.msra.mxu0 0.0
        %391 = vmatprep.subr.mxu0 0.0
        %392 = vmatpush1.xpose.msra.mxu0 0.0
        %393 = vmatprep.subr.mxu0 0.0
        %394 = vmatpush1.xpose.msra.mxu0 0.0
        %395 = vmatprep.subr.mxu0 0.0
        %396 = vmatpush1.xpose.msra.mxu0 0.0
        %397 = vmatprep.subr.mxu0 0.0
        %398 = vmatpush1.xpose.msra.mxu0 0.0
        %399 = vmatprep.subr.mxu0 0.0
        %400 = vmatpush1.xpose.msra.mxu0 0.0
        %401 = vmatprep.subr.mxu0 0.0
        %402 = vmatpush1.xpose.msra.mxu0 %v369
        %403 = vmatprep.subr.mxu0 0.0
        %404 = vmatpush2.xpose.msra.mxu0 0.0
        %405 = vmatprep.subr.mxu0 0.0
        %406 = vmatpush2.xpose.msra.mxu0 0.0
        %407 = vmatprep.subr.mxu0 0.0
        %408 = vmatpush2.xpose.msra.mxu0 0.0
        %409 = vmatprep.subr.mxu0 0.0
        %410 = vmatpush2.xpose.msra.mxu0 0.0
        %411 = vmatprep.subr.mxu0 0.0
        %412 = vmatpush2.xpose.msra.mxu0 0.0
        %413 = vmatprep.subr.mxu0 0.0
        %414 = vmatpush2.xpose.msra.mxu0 0.0
        %415 = vmatprep.subr.mxu0 0.0
        %416 = vmatpush2.xpose.msra.mxu0 0.0
        %417 = vmatprep.subr.mxu0 0.0
        %418 = vmatpush2.xpose.msra.mxu0 0.0
        %419 = vmatprep.subr.mxu0 0.0
        %420 = vmatpush2.xpose.msra.mxu0 0.0
        %421 = vmatprep.subr.mxu0 0.0
        %422 = vmatpush2.xpose.msra.mxu0 0.0
        %423 = vmatprep.subr.mxu0 0.0
        %424 = vmatpush2.xpose.msra.mxu0 0.0
        %425 = vmatprep.subr.mxu0 0.0
        %426 = vmatpush2.xpose.msra.mxu0 0.0
        %427 = vmatprep.subr.mxu0 0.0
        %428 = vmatpush2.xpose.msra.mxu0 0.0
        %429 = vmatprep.subr.mxu0 0.0
        %430 = vmatpush2.xpose.msra.mxu0 0.0
        %431 = vmatprep.subr.mxu0 0.0
        %432 = vmatpush2.xpose.msra.mxu0 0.0
        %433 = vmatprep.subr.mxu0 0.0
        %434 = vmatpush2.xpose.msra.mxu0 0.0
        %435 = vmatprep.mubr.f32.mxu0 0.0
        %436 = vmatmul.mubr.f32.gmra.mxu0 %v367
        %v437 = vpop.f32.mrf.mxu0
        %v438 = vadd.f32 0.0, %v437
        %v439 = vpop.f32.mrf.mxu0
        %440 = vdwg.mxu0
        %v441 = vmul.f32 %v438, 0.35355338
        %v442 = vsel %vm362, %v441, -1e+30
        %v443 = vsel %vm366, %v442, -inf
        %444 = vmax.xlane.f32.xlu0 %v443
        %v445 = vpop.xlane.xlu0 %444
        %v446 = vsub.f32 %v442, %v445
        %v447 = vmul.f32 %v446, 1.442695
        %v448 = vpow.pop %v447
        %v449 = vsel %vm366, %v448, 0.0
        %450 = vadd.xlane.f32.xlu0 %v449
        %v451 = vpop.xlane.xlu0 %450
        %v452 = vrcp.pop %v451
        %v453 = vmul.f32 %v448, %v452
        %454 = vrot.lane.b32.xlu0 %v281, 120
        %v455 = vpop.permute.xlu0 %454
        %456 = vrot.lane.b32.xlu0 %v281, 88
        %v457 = vpop.permute.xlu0 %456
        %v458 = vsel %vm366, %v455, 0
        %v460 = vsel %vm366, %v457, 0
        %462 = vmatprep.subr.mxu0 0.0
        %463 = vmatpush1.xpose.msra.mxu0 0.0
        %464 = vmatprep.subr.mxu0 0.0
        %465 = vmatpush1.xpose.msra.mxu0 0.0
        %466 = vmatprep.subr.mxu0 0.0
        %467 = vmatpush1.xpose.msra.mxu0 0.0
        %468 = vmatprep.subr.mxu0 0.0
        %469 = vmatpush1.xpose.msra.mxu0 0.0
        %470 = vmatprep.subr.mxu0 0.0
        %471 = vmatpush1.xpose.msra.mxu0 0.0
        %472 = vmatprep.subr.mxu0 0.0
        %473 = vmatpush1.xpose.msra.mxu0 0.0
        %474 = vmatprep.subr.mxu0 0.0
        %475 = vmatpush1.xpose.msra.mxu0 0.0
        %476 = vmatprep.subr.mxu0 0.0
        %477 = vmatpush1.xpose.msra.mxu0 0.0
        %478 = vmatprep.subr.mxu0 0.0
        %479 = vmatpush1.xpose.msra.mxu0 0.0
        %480 = vmatprep.subr.mxu0 0.0
        %481 = vmatpush1.xpose.msra.mxu0 0.0
        %482 = vmatprep.subr.mxu0 0.0
        %483 = vmatpush1.xpose.msra.mxu0 0.0
        %484 = vmatprep.subr.mxu0 0.0
        %485 = vmatpush1.xpose.msra.mxu0 0.0
        %486 = vmatprep.subr.mxu0 0.0
        %487 = vmatpush1.xpose.msra.mxu0 0.0
        %488 = vmatprep.subr.mxu0 0.0
        %489 = vmatpush1.xpose.msra.mxu0 0.0
        %490 = vmatprep.subr.mxu0 0.0
        %491 = vmatpush1.xpose.msra.mxu0 0.0
        %492 = vmatprep.subr.mxu0 0.0
        %493 = vmatpush1.xpose.msra.mxu0 %v460
        %494 = vmatprep.subr.mxu0 0.0
        %495 = vmatpush2.xpose.msra.mxu0 0.0
        %496 = vmatprep.subr.mxu0 0.0
        %497 = vmatpush2.xpose.msra.mxu0 0.0
        %498 = vmatprep.subr.mxu0 0.0
        %499 = vmatpush2.xpose.msra.mxu0 0.0
        %500 = vmatprep.subr.mxu0 0.0
        %501 = vmatpush2.xpose.msra.mxu0 0.0
        %502 = vmatprep.subr.mxu0 0.0
        %503 = vmatpush2.xpose.msra.mxu0 0.0
        %504 = vmatprep.subr.mxu0 0.0
        %505 = vmatpush2.xpose.msra.mxu0 0.0
        %506 = vmatprep.subr.mxu0 0.0
        %507 = vmatpush2.xpose.msra.mxu0 0.0
        %508 = vmatprep.subr.mxu0 0.0
        %509 = vmatpush2.xpose.msra.mxu0 0.0
        %510 = vmatprep.subr.mxu0 0.0
        %511 = vmatpush2.xpose.msra.mxu0 0.0
        %512 = vmatprep.subr.mxu0 0.0
        %513 = vmatpush2.xpose.msra.mxu0 0.0
        %514 = vmatprep.subr.mxu0 0.0
        %515 = vmatpush2.xpose.msra.mxu0 0.0
        %516 = vmatprep.subr.mxu0 0.0
        %517 = vmatpush2.xpose.msra.mxu0 0.0
        %518 = vmatprep.subr.mxu0 0.0
        %519 = vmatpush2.xpose.msra.mxu0 0.0
        %520 = vmatprep.subr.mxu0 0.0
        %521 = vmatpush2.xpose.msra.mxu0 0.0
        %522 = vmatprep.subr.mxu0 0.0
        %523 = vmatpush2.xpose.msra.mxu0 0.0
        %524 = vmatprep.subr.mxu0 0.0
        %525 = vmatpush2.xpose.msra.mxu0 0.0
        %526 = vmatprep.mubr.f32.mxu0 0.0
        %527 = vmatmul.mubr.f32.gmra.mxu0 %v458
        %v528 = vpop.f32.mrf.mxu0
        %v529 = vadd.f32 0.0, %v528
        %v530 = vpop.f32.mrf.mxu0
        %531 = vdwg.mxu0
        %v532 = vmul.f32 %v529, 0.35355338
        %v533 = vsel %vm362, %v532, -1e+30
        %v534 = vsel %vm366, %v533, -inf
        %535 = vmax.xlane.f32.xlu0 %v534
        %v536 = vpop.xlane.xlu0 %535
        %v537 = vsub.f32 %v533, %v536
        %v538 = vmul.f32 %v537, 1.442695
        %v539 = vpow.pop %v538
        %v540 = vsel %vm366, %v539, 0.0
        %541 = vadd.xlane.f32.xlu0 %v540
        %v542 = vpop.xlane.xlu0 %541
        %v543 = vrcp.pop %v542
        %v544 = vmul.f32 %v539, %v543
        %546 = vrot.lane.b32.xlu0 %v355, 96
        %v547 = vpop.permute.xlu0 %546
        %v550 = vsel %vm366, %v544, 0
        %552 = vmatprep.subr.mxu0 0.0
        %553 = vmatpush1.msra.mxu0 0.0
        %554 = vmatprep.subr.mxu0 0.0
        %555 = vmatpush1.msra.mxu0 0.0
        %556 = vmatprep.subr.mxu0 0.0
        %557 = vmatpush1.msra.mxu0 0.0
        %558 = vmatprep.subr.mxu0 0.0
        %559 = vmatpush1.msra.mxu0 0.0
        %560 = vmatprep.subr.mxu0 0.0
        %561 = vmatpush1.msra.mxu0 0.0
        %562 = vmatprep.subr.mxu0 0.0
        %563 = vmatpush1.msra.mxu0 0.0
        %564 = vmatprep.subr.mxu0 0.0
        %565 = vmatpush1.msra.mxu0 0.0
        %566 = vmatprep.subr.mxu0 0.0
        %567 = vmatpush1.msra.mxu0 0.0
        %568 = vmatprep.subr.mxu0 0.0
        %569 = vmatpush1.msra.mxu0 0.0
        %570 = vmatprep.subr.mxu0 0.0
        %571 = vmatpush1.msra.mxu0 0.0
        %572 = vmatprep.subr.mxu0 0.0
        %573 = vmatpush1.msra.mxu0 0.0
        %574 = vmatprep.subr.mxu0 0.0
        %575 = vmatpush1.msra.mxu0 0.0
        %576 = vmatprep.subr.mxu0 0.0
        %577 = vmatpush1.msra.mxu0 0.0
        %578 = vmatprep.subr.mxu0 0.0
        %579 = vmatpush1.msra.mxu0 0.0
        %580 = vmatprep.subr.mxu0 0.0
        %581 = vmatpush1.msra.mxu0 0.0
        %582 = vmatprep.subr.mxu0 0.0
        %583 = vmatpush1.msra.mxu0 %v547
        %584 = vmatprep.subr.mxu0 0.0
        %585 = vmatpush2.msra.mxu0 0.0
        %586 = vmatprep.subr.mxu0 0.0
        %587 = vmatpush2.msra.mxu0 0.0
        %588 = vmatprep.subr.mxu0 0.0
        %589 = vmatpush2.msra.mxu0 0.0
        %590 = vmatprep.subr.mxu0 0.0
        %591 = vmatpush2.msra.mxu0 0.0
        %592 = vmatprep.subr.mxu0 0.0
        %593 = vmatpush2.msra.mxu0 0.0
        %594 = vmatprep.subr.mxu0 0.0
        %595 = vmatpush2.msra.mxu0 0.0
        %596 = vmatprep.subr.mxu0 0.0
        %597 = vmatpush2.msra.mxu0 0.0
        %598 = vmatprep.subr.mxu0 0.0
        %599 = vmatpush2.msra.mxu0 0.0
        %600 = vmatprep.subr.mxu0 0.0
        %601 = vmatpush2.msra.mxu0 0.0
        %602 = vmatprep.subr.mxu0 0.0
        %603 = vmatpush2.msra.mxu0 0.0
        %604 = vmatprep.subr.mxu0 0.0
        %605 = vmatpush2.msra.mxu0 0.0
        %606 = vmatprep.subr.mxu0 0.0
        %607 = vmatpush2.msra.mxu0 0.0
        %608 = vmatprep.subr.mxu0 0.0
        %609 = vmatpush2.msra.mxu0 0.0
        %610 = vmatprep.subr.mxu0 0.0
        %611 = vmatpush2.msra.mxu0 0.0
        %612 = vmatprep.subr.mxu0 0.0
        %613 = vmatpush2.msra.mxu0 0.0
        %614 = vmatprep.subr.mxu0 0.0
        %615 = vmatpush2.msra.mxu0 0.0
        %616 = vmatprep.mubr.f32.mxu0 0.0
        %617 = vmatmul.mubr.f32.gmra.mxu0 %v550
        %v618 = vpop.f32.mrf.mxu0
        %v619 = vadd.f32 0.0, %v618
        %v620 = vpop.f32.mrf.mxu0
        %621 = vdwg.mxu0
        %v623 = vsel %vm366, %v453, 0
        %625 = vmatprep.subr.mxu0 0.0
        %626 = vmatpush1.msra.mxu0 0.0
        %627 = vmatprep.subr.mxu0 0.0
        %628 = vmatpush1.msra.mxu0 0.0
        %629 = vmatprep.subr.mxu0 0.0
        %630 = vmatpush1.msra.mxu0 0.0
        %631 = vmatprep.subr.mxu0 0.0
        %632 = vmatpush1.msra.mxu0 0.0
        %633 = vmatprep.subr.mxu0 0.0
        %634 = vmatpush1.msra.mxu0 0.0
        %635 = vmatprep.subr.mxu0 0.0
        %636 = vmatpush1.msra.mxu0 0.0
        %637 = vmatprep.subr.mxu0 0.0
        %638 = vmatpush1.msra.mxu0 0.0
        %639 = vmatprep.subr.mxu0 0.0
        %640 = vmatpush1.msra.mxu0 0.0
        %641 = vmatprep.subr.mxu0 0.0
        %642 = vmatpush1.msra.mxu0 0.0
        %643 = vmatprep.subr.mxu0 0.0
        %644 = vmatpush1.msra.mxu0 0.0
        %645 = vmatprep.subr.mxu0 0.0
        %646 = vmatpush1.msra.mxu0 0.0
        %647 = vmatprep.subr.mxu0 0.0
        %648 = vmatpush1.msra.mxu0 0.0
        %649 = vmatprep.subr.mxu0 0.0
        %650 = vmatpush1.msra.mxu0 0.0
        %651 = vmatprep.subr.mxu0 0.0
        %652 = vmatpush1.msra.mxu0 0.0
        %653 = vmatprep.subr.mxu0 0.0
        %654 = vmatpush1.msra.mxu0 0.0
        %655 = vmatprep.subr.mxu0 0.0
        %656 = vmatpush1.msra.mxu0 %v355
        %657 = vmatprep.subr.mxu0 0.0
        %658 = vmatpush2.msra.mxu0 0.0
        %659 = vmatprep.subr.mxu0 0.0
        %660 = vmatpush2.msra.mxu0 0.0
        %661 = vmatprep.subr.mxu0 0.0
        %662 = vmatpush2.msra.mxu0 0.0
        %663 = vmatprep.subr.mxu0 0.0
        %664 = vmatpush2.msra.mxu0 0.0
        %665 = vmatprep.subr.mxu0 0.0
        %666 = vmatpush2.msra.mxu0 0.0
        %667 = vmatprep.subr.mxu0 0.0
        %668 = vmatpush2.msra.mxu0 0.0
        %669 = vmatprep.subr.mxu0 0.0
        %670 = vmatpush2.msra.mxu0 0.0
        %671 = vmatprep.subr.mxu0 0.0
        %672 = vmatpush2.msra.mxu0 0.0
        %673 = vmatprep.subr.mxu0 0.0
        %674 = vmatpush2.msra.mxu0 0.0
        %675 = vmatprep.subr.mxu0 0.0
        %676 = vmatpush2.msra.mxu0 0.0
        %677 = vmatprep.subr.mxu0 0.0
        %678 = vmatpush2.msra.mxu0 0.0
        %679 = vmatprep.subr.mxu0 0.0
        %680 = vmatpush2.msra.mxu0 0.0
        %681 = vmatprep.subr.mxu0 0.0
        %682 = vmatpush2.msra.mxu0 0.0
        %683 = vmatprep.subr.mxu0 0.0
        %684 = vmatpush2.msra.mxu0 0.0
        %685 = vmatprep.subr.mxu0 0.0
        %686 = vmatpush2.msra.mxu0 0.0
        %687 = vmatprep.subr.mxu0 0.0
        %688 = vmatpush2.msra.mxu0 0.0
        %689 = vmatprep.mubr.f32.mxu0 0.0
        %690 = vmatmul.mubr.f32.gmra.mxu0 %v623
        %v691 = vpop.f32.mrf.mxu0
        %v692 = vadd.f32 %v619, %v691
        %v693 = vpop.f32.mrf.mxu0
        %694 = vdwg.mxu0
        %695 = vrot.lane.b32.xlu0 %v281, 112
        %v696 = vpop.permute.xlu0 %695
        %697 = vrot.lane.b32.xlu0 %v281, 80
        %v698 = vpop.permute.xlu0 %697
        %v699 = vsel %vm366, %v696, 0
        %v701 = vsel %vm366, %v698, 0
        %703 = vmatprep.subr.mxu0 0.0
        %704 = vmatpush1.xpose.msra.mxu0 0.0
        %705 = vmatprep.subr.mxu0 0.0
        %706 = vmatpush1.xpose.msra.mxu0 0.0
        %707 = vmatprep.subr.mxu0 0.0
        %708 = vmatpush1.xpose.msra.mxu0 0.0
        %709 = vmatprep.subr.mxu0 0.0
        %710 = vmatpush1.xpose.msra.mxu0 0.0
        %711 = vmatprep.subr.mxu0 0.0
        %712 = vmatpush1.xpose.msra.mxu0 0.0
        %713 = vmatprep.subr.mxu0 0.0
        %714 = vmatpush1.xpose.msra.mxu0 0.0
        %715 = vmatprep.subr.mxu0 0.0
        %716 = vmatpush1.xpose.msra.mxu0 0.0
        %717 = vmatprep.subr.mxu0 0.0
        %718 = vmatpush1.xpose.msra.mxu0 0.0
        %719 = vmatprep.subr.mxu0 0.0
        %720 = vmatpush1.xpose.msra.mxu0 0.0
        %721 = vmatprep.subr.mxu0 0.0
        %722 = vmatpush1.xpose.msra.mxu0 0.0
        %723 = vmatprep.subr.mxu0 0.0
        %724 = vmatpush1.xpose.msra.mxu0 0.0
        %725 = vmatprep.subr.mxu0 0.0
        %726 = vmatpush1.xpose.msra.mxu0 0.0
        %727 = vmatprep.subr.mxu0 0.0
        %728 = vmatpush1.xpose.msra.mxu0 0.0
        %729 = vmatprep.subr.mxu0 0.0
        %730 = vmatpush1.xpose.msra.mxu0 0.0
        %731 = vmatprep.subr.mxu0 0.0
        %732 = vmatpush1.xpose.msra.mxu0 0.0
        %733 = vmatprep.subr.mxu0 0.0
        %734 = vmatpush1.xpose.msra.mxu0 %v701
        %735 = vmatprep.subr.mxu0 0.0
        %736 = vmatpush2.xpose.msra.mxu0 0.0
        %737 = vmatprep.subr.mxu0 0.0
        %738 = vmatpush2.xpose.msra.mxu0 0.0
        %739 = vmatprep.subr.mxu0 0.0
        %740 = vmatpush2.xpose.msra.mxu0 0.0
        %741 = vmatprep.subr.mxu0 0.0
        %742 = vmatpush2.xpose.msra.mxu0 0.0
        %743 = vmatprep.subr.mxu0 0.0
        %744 = vmatpush2.xpose.msra.mxu0 0.0
        %745 = vmatprep.subr.mxu0 0.0
        %746 = vmatpush2.xpose.msra.mxu0 0.0
        %747 = vmatprep.subr.mxu0 0.0
        %748 = vmatpush2.xpose.msra.mxu0 0.0
        %749 = vmatprep.subr.mxu0 0.0
        %750 = vmatpush2.xpose.msra.mxu0 0.0
        %751 = vmatprep.subr.mxu0 0.0
        %752 = vmatpush2.xpose.msra.mxu0 0.0
        %753 = vmatprep.subr.mxu0 0.0
        %754 = vmatpush2.xpose.msra.mxu0 0.0
        %755 = vmatprep.subr.mxu0 0.0
        %756 = vmatpush2.xpose.msra.mxu0 0.0
        %757 = vmatprep.subr.mxu0 0.0
        %758 = vmatpush2.xpose.msra.mxu0 0.0
        %759 = vmatprep.subr.mxu0 0.0
        %760 = vmatpush2.xpose.msra.mxu0 0.0
        %761 = vmatprep.subr.mxu0 0.0
        %762 = vmatpush2.xpose.msra.mxu0 0.0
        %763 = vmatprep.subr.mxu0 0.0
        %764 = vmatpush2.xpose.msra.mxu0 0.0
        %765 = vmatprep.subr.mxu0 0.0
        %766 = vmatpush2.xpose.msra.mxu0 0.0
        %767 = vmatprep.mubr.f32.mxu0 0.0
        %768 = vmatmul.mubr.f32.gmra.mxu0 %v699
        %v769 = vpop.f32.mrf.mxu0
        %v770 = vadd.f32 0.0, %v769
        %v771 = vpop.f32.mrf.mxu0
        %772 = vdwg.mxu0
        %v773 = vmul.f32 %v770, 0.35355338
        %v774 = vsel %vm362, %v773, -1e+30
        %v775 = vsel %vm366, %v774, -inf
        %776 = vmax.xlane.f32.xlu0 %v775
        %v777 = vpop.xlane.xlu0 %776
        %v778 = vsub.f32 %v774, %v777
        %v779 = vmul.f32 %v778, 1.442695
        %v780 = vpow.pop %v779
        %v781 = vsel %vm366, %v780, 0.0
        %782 = vadd.xlane.f32.xlu0 %v781
        %v783 = vpop.xlane.xlu0 %782
        %v784 = vrcp.pop %v783
        %v785 = vmul.f32 %v780, %v784
        %786 = vrot.lane.b32.xlu0 %v355, 64
        %v787 = vpop.permute.xlu0 %786
        %v790 = vsel %vm366, %v785, 0
        %792 = vmatprep.subr.mxu0 0.0
        %793 = vmatpush1.msra.mxu0 0.0
        %794 = vmatprep.subr.mxu0 0.0
        %795 = vmatpush1.msra.mxu0 0.0
        %796 = vmatprep.subr.mxu0 0.0
        %797 = vmatpush1.msra.mxu0 0.0
        %798 = vmatprep.subr.mxu0 0.0
        %799 = vmatpush1.msra.mxu0 0.0
        %800 = vmatprep.subr.mxu0 0.0
        %801 = vmatpush1.msra.mxu0 0.0
        %802 = vmatprep.subr.mxu0 0.0
        %803 = vmatpush1.msra.mxu0 0.0
        %804 = vmatprep.subr.mxu0 0.0
        %805 = vmatpush1.msra.mxu0 0.0
        %806 = vmatprep.subr.mxu0 0.0
        %807 = vmatpush1.msra.mxu0 0.0
        %808 = vmatprep.subr.mxu0 0.0
        %809 = vmatpush1.msra.mxu0 0.0
        %810 = vmatprep.subr.mxu0 0.0
        %811 = vmatpush1.msra.mxu0 0.0
        %812 = vmatprep.subr.mxu0 0.0
        %813 = vmatpush1.msra.mxu0 0.0
        %814 = vmatprep.subr.mxu0 0.0
        %815 = vmatpush1.msra.mxu0 0.0
        %816 = vmatprep.subr.mxu0 0.0
        %817 = vmatpush1.msra.mxu0 0.0
        %818 = vmatprep.subr.mxu0 0.0
        %819 = vmatpush1.msra.mxu0 0.0
        %820 = vmatprep.subr.mxu0 0.0
        %821 = vmatpush1.msra.mxu0 0.0
        %822 = vmatprep.subr.mxu0 0.0
        %823 = vmatpush1.msra.mxu0 %v787
        %824 = vmatprep.subr.mxu0 0.0
        %825 = vmatpush2.msra.mxu0 0.0
        %826 = vmatprep.subr.mxu0 0.0
        %827 = vmatpush2.msra.mxu0 0.0
        %828 = vmatprep.subr.mxu0 0.0
        %829 = vmatpush2.msra.mxu0 0.0
        %830 = vmatprep.subr.mxu0 0.0
        %831 = vmatpush2.msra.mxu0 0.0
        %832 = vmatprep.subr.mxu0 0.0
        %833 = vmatpush2.msra.mxu0 0.0
        %834 = vmatprep.subr.mxu0 0.0
        %835 = vmatpush2.msra.mxu0 0.0
        %836 = vmatprep.subr.mxu0 0.0
        %837 = vmatpush2.msra.mxu0 0.0
        %838 = vmatprep.subr.mxu0 0.0
        %839 = vmatpush2.msra.mxu0 0.0
        %840 = vmatprep.subr.mxu0 0.0
        %841 = vmatpush2.msra.mxu0 0.0
        %842 = vmatprep.subr.mxu0 0.0
        %843 = vmatpush2.msra.mxu0 0.0
        %844 = vmatprep.subr.mxu0 0.0
        %845 = vmatpush2.msra.mxu0 0.0
        %846 = vmatprep.subr.mxu0 0.0
        %847 = vmatpush2.msra.mxu0 0.0
        %848 = vmatprep.subr.mxu0 0.0
        %849 = vmatpush2.msra.mxu0 0.0
        %850 = vmatprep.subr.mxu0 0.0
        %851 = vmatpush2.msra.mxu0 0.0
        %852 = vmatprep.subr.mxu0 0.0
        %853 = vmatpush2.msra.mxu0 0.0
        %854 = vmatprep.subr.mxu0 0.0
        %855 = vmatpush2.msra.mxu0 0.0
        %856 = vmatprep.mubr.f32.mxu0 0.0
        %857 = vmatmul.mubr.f32.gmra.mxu0 %v790
        %v858 = vpop.f32.mrf.mxu0
        %v859 = vadd.f32 0.0, %v858
        %v860 = vpop.f32.mrf.mxu0
        %861 = vdwg.mxu0
        %v862 = vadd.f32 %v692, %v859
        %863 = vrot.lane.b32.xlu0 %v281, 104
        %v864 = vpop.permute.xlu0 %863
        %865 = vrot.lane.b32.xlu0 %v281, 72
        %v866 = vpop.permute.xlu0 %865
        %v867 = vsel %vm366, %v864, 0
        %v869 = vsel %vm366, %v866, 0
        %871 = vmatprep.subr.mxu0 0.0
        %872 = vmatpush1.xpose.msra.mxu0 0.0
        %873 = vmatprep.subr.mxu0 0.0
        %874 = vmatpush1.xpose.msra.mxu0 0.0
        %875 = vmatprep.subr.mxu0 0.0
        %876 = vmatpush1.xpose.msra.mxu0 0.0
        %877 = vmatprep.subr.mxu0 0.0
        %878 = vmatpush1.xpose.msra.mxu0 0.0
        %879 = vmatprep.subr.mxu0 0.0
        %880 = vmatpush1.xpose.msra.mxu0 0.0
        %881 = vmatprep.subr.mxu0 0.0
        %882 = vmatpush1.xpose.msra.mxu0 0.0
        %883 = vmatprep.subr.mxu0 0.0
        %884 = vmatpush1.xpose.msra.mxu0 0.0
        %885 = vmatprep.subr.mxu0 0.0
        %886 = vmatpush1.xpose.msra.mxu0 0.0
        %887 = vmatprep.subr.mxu0 0.0
        %888 = vmatpush1.xpose.msra.mxu0 0.0
        %889 = vmatprep.subr.mxu0 0.0
        %890 = vmatpush1.xpose.msra.mxu0 0.0
        %891 = vmatprep.subr.mxu0 0.0
        %892 = vmatpush1.xpose.msra.mxu0 0.0
        %893 = vmatprep.subr.mxu0 0.0
        %894 = vmatpush1.xpose.msra.mxu0 0.0
        %895 = vmatprep.subr.mxu0 0.0
        %896 = vmatpush1.xpose.msra.mxu0 0.0
        %897 = vmatprep.subr.mxu0 0.0
        %898 = vmatpush1.xpose.msra.mxu0 0.0
        %899 = vmatprep.subr.mxu0 0.0
        %900 = vmatpush1.xpose.msra.mxu0 0.0
        %901 = vmatprep.subr.mxu0 0.0
        %902 = vmatpush1.xpose.msra.mxu0 %v869
        %903 = vmatprep.subr.mxu0 0.0
        %904 = vmatpush2.xpose.msra.mxu0 0.0
        %905 = vmatprep.subr.mxu0 0.0
        %906 = vmatpush2.xpose.msra.mxu0 0.0
        %907 = vmatprep.subr.mxu0 0.0
        %908 = vmatpush2.xpose.msra.mxu0 0.0
        %909 = vmatprep.subr.mxu0 0.0
        %910 = vmatpush2.xpose.msra.mxu0 0.0
        %911 = vmatprep.subr.mxu0 0.0
        %912 = vmatpush2.xpose.msra.mxu0 0.0
        %913 = vmatprep.subr.mxu0 0.0
        %914 = vmatpush2.xpose.msra.mxu0 0.0
        %915 = vmatprep.subr.mxu0 0.0
        %916 = vmatpush2.xpose.msra.mxu0 0.0
        %917 = vmatprep.subr.mxu0 0.0
        %918 = vmatpush2.xpose.msra.mxu0 0.0
        %919 = vmatprep.subr.mxu0 0.0
        %920 = vmatpush2.xpose.msra.mxu0 0.0
        %921 = vmatprep.subr.mxu0 0.0
        %922 = vmatpush2.xpose.msra.mxu0 0.0
        %923 = vmatprep.subr.mxu0 0.0
        %924 = vmatpush2.xpose.msra.mxu0 0.0
        %925 = vmatprep.subr.mxu0 0.0
        %926 = vmatpush2.xpose.msra.mxu0 0.0
        %927 = vmatprep.subr.mxu0 0.0
        %928 = vmatpush2.xpose.msra.mxu0 0.0
        %929 = vmatprep.subr.mxu0 0.0
        %930 = vmatpush2.xpose.msra.mxu0 0.0
        %931 = vmatprep.subr.mxu0 0.0
        %932 = vmatpush2.xpose.msra.mxu0 0.0
        %933 = vmatprep.subr.mxu0 0.0
        %934 = vmatpush2.xpose.msra.mxu0 0.0
        %935 = vmatprep.mubr.f32.mxu0 0.0
        %936 = vmatmul.mubr.f32.gmra.mxu0 %v867
        %v937 = vpop.f32.mrf.mxu0
        %v938 = vadd.f32 0.0, %v937
        %v939 = vpop.f32.mrf.mxu0
        %940 = vdwg.mxu0
        %v941 = vmul.f32 %v938, 0.35355338
        %v942 = vsel %vm362, %v941, -1e+30
        %v943 = vsel %vm366, %v942, -inf
        %944 = vmax.xlane.f32.xlu0 %v943
        %v945 = vpop.xlane.xlu0 %944
        %v946 = vsub.f32 %v942, %v945
        %v947 = vmul.f32 %v946, 1.442695
        %v948 = vpow.pop %v947
        %v949 = vsel %vm366, %v948, 0.0
        %950 = vadd.xlane.f32.xlu0 %v949
        %v951 = vpop.xlane.xlu0 %950
        %v952 = vrcp.pop %v951
        %v953 = vmul.f32 %v948, %v952
        %954 = vrot.lane.b32.xlu0 %v355, 32
        %v955 = vpop.permute.xlu0 %954
        %v958 = vsel %vm366, %v953, 0
        %960 = vmatprep.subr.mxu0 0.0
        %961 = vmatpush1.msra.mxu0 0.0
        %962 = vmatprep.subr.mxu0 0.0
        %963 = vmatpush1.msra.mxu0 0.0
        %964 = vmatprep.subr.mxu0 0.0
        %965 = vmatpush1.msra.mxu0 0.0
        %966 = vmatprep.subr.mxu0 0.0
        %967 = vmatpush1.msra.mxu0 0.0
        %968 = vmatprep.subr.mxu0 0.0
        %969 = vmatpush1.msra.mxu0 0.0
        %970 = vmatprep.subr.mxu0 0.0
        %971 = vmatpush1.msra.mxu0 0.0
        %972 = vmatprep.subr.mxu0 0.0
        %973 = vmatpush1.msra.mxu0 0.0
        %974 = vmatprep.subr.mxu0 0.0
        %975 = vmatpush1.msra.mxu0 0.0
        %976 = vmatprep.subr.mxu0 0.0
        %977 = vmatpush1.msra.mxu0 0.0
        %978 = vmatprep.subr.mxu0 0.0
        %979 = vmatpush1.msra.mxu0 0.0
        %980 = vmatprep.subr.mxu0 0.0
        %981 = vmatpush1.msra.mxu0 0.0
        %982 = vmatprep.subr.mxu0 0.0
        %983 = vmatpush1.msra.mxu0 0.0
        %984 = vmatprep.subr.mxu0 0.0
        %985 = vmatpush1.msra.mxu0 0.0
        %986 = vmatprep.subr.mxu0 0.0
        %987 = vmatpush1.msra.mxu0 0.0
        %988 = vmatprep.subr.mxu0 0.0
        %989 = vmatpush1.msra.mxu0 0.0
        %990 = vmatprep.subr.mxu0 0.0
        %991 = vmatpush1.msra.mxu0 %v955
        %992 = vmatprep.subr.mxu0 0.0
        %993 = vmatpush2.msra.mxu0 0.0
        %994 = vmatprep.subr.mxu0 0.0
        %995 = vmatpush2.msra.mxu0 0.0
        %996 = vmatprep.subr.mxu0 0.0
        %997 = vmatpush2.msra.mxu0 0.0
        %998 = vmatprep.subr.mxu0 0.0
        %999 = vmatpush2.msra.mxu0 0.0
        %1000 = vmatprep.subr.mxu0 0.0
        %1001 = vmatpush2.msra.mxu0 0.0
        %1002 = vmatprep.subr.mxu0 0.0
        %1003 = vmatpush2.msra.mxu0 0.0
        %1004 = vmatprep.subr.mxu0 0.0
        %1005 = vmatpush2.msra.mxu0 0.0
        %1006 = vmatprep.subr.mxu0 0.0
        %1007 = vmatpush2.msra.mxu0 0.0
        %1008 = vmatprep.subr.mxu0 0.0
        %1009 = vmatpush2.msra.mxu0 0.0
        %1010 = vmatprep.subr.mxu0 0.0
        %1011 = vmatpush2.msra.mxu0 0.0
        %1012 = vmatprep.subr.mxu0 0.0
        %1013 = vmatpush2.msra.mxu0 0.0
        %1014 = vmatprep.subr.mxu0 0.0
        %1015 = vmatpush2.msra.mxu0 0.0
        %1016 = vmatprep.subr.mxu0 0.0
        %1017 = vmatpush2.msra.mxu0 0.0
        %1018 = vmatprep.subr.mxu0 0.0
        %1019 = vmatpush2.msra.mxu0 0.0
        %1020 = vmatprep.subr.mxu0 0.0
        %1021 = vmatpush2.msra.mxu0 0.0
        %1022 = vmatprep.subr.mxu0 0.0
        %1023 = vmatpush2.msra.mxu0 0.0
        %1024 = vmatprep.mubr.f32.mxu0 0.0
        %1025 = vmatmul.mubr.f32.gmra.mxu0 %v958
        %v1026 = vpop.f32.mrf.mxu0
        %v1027 = vadd.f32 0.0, %v1026
        %v1028 = vpop.f32.mrf.mxu0
        %1029 = vdwg.mxu0
        %v1030 = vadd.f32 %v862, %v1027
        %v1031 = vld [vmem:[#allocation5 + $0xe5] sm:$0x1]
        %v1032 = vlaneseq
        %v1033 = vshrl.u32 %v1032, 7
        %v1034 = vsub.s32 0, %v1033
        %v1035 = vrot.slane %v1031, %v1034
        %v1036 = vadd.f32 %v1030, %v1035
        %v1037 = vadd.f32 %v174, %v1036
        %v1038 = vld [vmem:[#allocation5 + $0xe2] sm:$0x1]
        %v1039 = vld [vmem:[#allocation5 + $0xe3] sm:$0x1]
        %v1040 = vsel %vm177, %v1037, 0.0
        %1041 = vadd.xlane.f32.xlu0 %v1040
        %v1042 = vpop.xlane.xlu0 %1041
        %v1043 = vmul.f32 %v1042, %v181
        %v1044 = vsub.f32 %v1037, %v1043
        %v1045 = vmul.f32 %v1044, %v1044
        %v1046 = vsel %vm177, %v1045, 0.0
        %1047 = vadd.xlane.f32.xlu0 %v1046
        %v1048 = vpop.xlane.xlu0 %1047
        %v1049 = vmul.f32 %v1048, %v181
        %v1050 = vadd.f32 %v1049, 1e-05
        %v1051 = vrsqrt.pop %v1050
        %v1052 = vmul.f32 %v1044, %v1051
        %v1053 = vlaneseq
        %v1054 = vshrl.u32 %v1053, 7
        %v1055 = vsub.s32 0, %v1054
        %v1056 = vrot.slane %v1038, %v1055
        %v1057 = vmul.f32 %v1052, %v1056
        %v1058 = vlaneseq
        %v1059 = vshrl.u32 %v1058, 7
        %v1060 = vsub.s32 0, %v1059
        %v1061 = vrot.slane %v1039, %v1060
        %v1062 = vadd.f32 %v1057, %v1061
        %v1063 = vld [vmem:[#allocation5 + $0x40] sm:$0xff]
        %v1064 = vld [vmem:[#allocation5 + $0x48] sm:$0xff]
        %v1065 = vld [vmem:[#allocation5 + $0x50] sm:$0xff]
        %v1066 = vld [vmem:[#allocation5 + $0x58] sm:$0xff]
        %v1067 = vld [vmem:[#allocation5 + $0xe6] sm:$0x1]
        %v1068 = vlaneseq
        %v1069 = vshrl.u32 %v1068, 7
        %v1070 = vsub.s32 0, %v1069
        %v1071 = vrot.slane %v1067, %v1070
        %v1073 = vsel %vm177, %v1062, 0
        %1075 = vmatprep.subr.mxu0 0.0
        %1076 = vmatpush1.msra.mxu0 0.0
        %1077 = vmatprep.subr.mxu0 0.0
        %1078 = vmatpush1.msra.mxu0 0.0
        %1079 = vmatprep.subr.mxu0 0.0
        %1080 = vmatpush1.msra.mxu0 0.0
        %1081 = vmatprep.subr.mxu0 0.0
        %1082 = vmatpush1.msra.mxu0 0.0
        %1083 = vmatprep.subr.mxu0 0.0
        %1084 = vmatpush1.msra.mxu0 0.0
        %1085 = vmatprep.subr.mxu0 0.0
        %1086 = vmatpush1.msra.mxu0 0.0
        %1087 = vmatprep.subr.mxu0 0.0
        %1088 = vmatpush1.msra.mxu0 0.0
        %1089 = vmatprep.subr.mxu0 0.0
        %1090 = vmatpush1.msra.mxu0 0.0
        %1091 = vmatprep.subr.mxu0 0.0
        %1092 = vmatpush1.msra.mxu0 0.0
        %1093 = vmatprep.subr.mxu0 0.0
        %1094 = vmatpush1.msra.mxu0 0.0
        %1095 = vmatprep.subr.mxu0 0.0
        %1096 = vmatpush1.msra.mxu0 0.0
        %1097 = vmatprep.subr.mxu0 0.0
        %1098 = vmatpush1.msra.mxu0 0.0
        %1099 = vmatprep.subr.mxu0 0.0
        %1100 = vmatpush1.msra.mxu0 %v1066
        %1101 = vmatprep.subr.mxu0 0.0
        %1102 = vmatpush1.msra.mxu0 %v1065
        %1103 = vmatprep.subr.mxu0 0.0
        %1104 = vmatpush1.msra.mxu0 %v1064
        %1105 = vmatprep.subr.mxu0 0.0
        %1106 = vmatpush1.msra.mxu0 %v1063
        %1107 = vmatprep.subr.mxu0 0.0
        %1108 = vmatpush2.msra.mxu0 0.0
        %1109 = vmatprep.subr.mxu0 0.0
        %1110 = vmatpush2.msra.mxu0 0.0
        %1111 = vmatprep.subr.mxu0 0.0
        %1112 = vmatpush2.msra.mxu0 0.0
        %1113 = vmatprep.subr.mxu0 0.0
        %1114 = vmatpush2.msra.mxu0 0.0
        %1115 = vmatprep.subr.mxu0 0.0
        %1116 = vmatpush2.msra.mxu0 0.0
        %1117 = vmatprep.subr.mxu0 0.0
        %1118 = vmatpush2.msra.mxu0 0.0
        %1119 = vmatprep.subr.mxu0 0.0
        %1120 = vmatpush2.msra.mxu0 0.0
        %1121 = vmatprep.subr.mxu0 0.0
        %1122 = vmatpush2.msra.mxu0 0.0
        %1123 = vmatprep.subr.mxu0 0.0
        %1124 = vmatpush2.msra.mxu0 0.0
        %1125 = vmatprep.subr.mxu0 0.0
        %1126 = vmatpush2.msra.mxu0 0.0
        %1127 = vmatprep.subr.mxu0 0.0
        %1128 = vmatpush2.msra.mxu0 0.0
        %1129 = vmatprep.subr.mxu0 0.0
        %1130 = vmatpush2.msra.mxu0 0.0
        %1131 = vmatprep.subr.mxu0 0.0
        %1132 = vmatpush2.msra.mxu0 0.0
        %1133 = vmatprep.subr.mxu0 0.0
        %1134 = vmatpush2.msra.mxu0 0.0
        %1135 = vmatprep.subr.mxu0 0.0
        %1136 = vmatpush2.msra.mxu0 0.0
        %1137 = vmatprep.subr.mxu0 0.0
        %1138 = vmatpush2.msra.mxu0 0.0
        %1139 = vmatprep.mubr.f32.mxu0 0.0
        %1140 = vmatmul.mubr.f32.gmra.mxu0 %v1073
        %v1141 = vpop.f32.mrf.mxu0
        %v1142 = vadd.f32 %v1071, %v1141
        %v1143 = vpop.f32.mrf.mxu0
        %1144 = vdwg.mxu0
        %v1145 = vmax.f32 %v1142, 0.0
        %v1146 = vld [vmem:[#allocation5 + $0x60] sm:$0xff]
        %v1147 = vld [vmem:[#allocation5 + $0x68] sm:$0xff]
        %v1148 = vld [vmem:[#allocation5 + $0x70] sm:$0xff]
        %v1149 = vld [vmem:[#allocation5 + $0x78] sm:$0xff]
        %v1150 = vld [vmem:[#allocation5 + $0x80] sm:$0xff]
        %v1151 = vld [vmem:[#allocation5 + $0x88] sm:$0xff]
        %v1152 = vld [vmem:[#allocation5 + $0x90] sm:$0xff]
        %v1153 = vld [vmem:[#allocation5 + $0x98] sm:$0xff]
        %v1154 = vld [vmem:[#allocation5 + $0xa0] sm:$0xff]
        %v1155 = vld [vmem:[#allocation5 + $0xa8] sm:$0xff]
        %v1156 = vld [vmem:[#allocation5 + $0xb0] sm:$0xff]
        %v1157 = vld [vmem:[#allocation5 + $0xb8] sm:$0xff]
        %v1158 = vld [vmem:[#allocation5 + $0xc0] sm:$0xff]
        %v1159 = vld [vmem:[#allocation5 + $0xc8] sm:$0xff]
        %v1160 = vld [vmem:[#allocation5 + $0xd0] sm:$0xff]
        %v1161 = vld [vmem:[#allocation5 + $0xd8] sm:$0xff]
        %1162 = vmatprep.subr.mxu0 0.0
        %1163 = vmatpush1.msra.mxu0 %v1161
        %1164 = vmatprep.subr.mxu0 0.0
        %1165 = vmatpush1.msra.mxu0 %v1160
        %1166 = vmatprep.subr.mxu0 0.0
        %1167 = vmatpush1.msra.mxu0 %v1159
        %1168 = vmatprep.subr.mxu0 0.0
        %1169 = vmatpush1.msra.mxu0 %v1158
        %1170 = vmatprep.subr.mxu0 0.0
        %1171 = vmatpush1.msra.mxu0 %v1157
        %1172 = vmatprep.subr.mxu0 0.0
        %1173 = vmatpush1.msra.mxu0 %v1156
        %1174 = vmatprep.subr.mxu0 0.0
        %1175 = vmatpush1.msra.mxu0 %v1155
        %1176 = vmatprep.subr.mxu0 0.0
        %1177 = vmatpush1.msra.mxu0 %v1154
        %1178 = vmatprep.subr.mxu0 0.0
        %1179 = vmatpush1.msra.mxu0 %v1153
        %1180 = vmatprep.subr.mxu0 0.0
        %1181 = vmatpush1.msra.mxu0 %v1152
        %1182 = vmatprep.subr.mxu0 0.0
        %1183 = vmatpush1.msra.mxu0 %v1151
        %1184 = vmatprep.subr.mxu0 0.0
        %1185 = vmatpush1.msra.mxu0 %v1150
        %1186 = vmatprep.subr.mxu0 0.0
        %1187 = vmatpush1.msra.mxu0 %v1149
        %1188 = vmatprep.subr.mxu0 0.0
        %1189 = vmatpush1.msra.mxu0 %v1148
        %1190 = vmatprep.subr.mxu0 0.0
        %1191 = vmatpush1.msra.mxu0 %v1147
        %1192 = vmatprep.subr.mxu0 0.0
        %1193 = vmatpush1.msra.mxu0 %v1146
        %1194 = vmatprep.subr.mxu0 0.0
        %1195 = vmatpush2.msra.mxu0 0.0
        %1196 = vmatprep.subr.mxu0 0.0
        %1197 = vmatpush2.msra.mxu0 0.0
        %1198 = vmatprep.subr.mxu0 0.0
        %1199 = vmatpush2.msra.mxu0 0.0
        %1200 = vmatprep.subr.mxu0 0.0
        %1201 = vmatpush2.msra.mxu0 0.0
        %1202 = vmatprep.subr.mxu0 0.0
        %1203 = vmatpush2.msra.mxu0 0.0
        %1204 = vmatprep.subr.mxu0 0.0
        %1205 = vmatpush2.msra.mxu0 0.0
        %1206 = vmatprep.subr.mxu0 0.0
        %1207 = vmatpush2.msra.mxu0 0.0
        %1208 = vmatprep.subr.mxu0 0.0
        %1209 = vmatpush2.msra.mxu0 0.0
        %1210 = vmatprep.subr.mxu0 0.0
        %1211 = vmatpush2.msra.mxu0 0.0
        %1212 = vmatprep.subr.mxu0 0.0
        %1213 = vmatpush2.msra.mxu0 0.0
        %1214 = vmatprep.subr.mxu0 0.0
        %1215 = vmatpush2.msra.mxu0 0.0
        %1216 = vmatprep.subr.mxu0 0.0
        %1217 = vmatpush2.msra.mxu0 0.0
        %1218 = vmatprep.subr.mxu0 0.0
        %1219 = vmatpush2.msra.mxu0 0.0
        %1220 = vmatprep.subr.mxu0 0.0
        %1221 = vmatpush2.msra.mxu0 0.0
        %1222 = vmatprep.subr.mxu0 0.0
        %1223 = vmatpush2.msra.mxu0 0.0
        %1224 = vmatprep.subr.mxu0 0.0
        %1225 = vmatpush2.msra.mxu0 0.0
        %1226 = vmatprep.mubr.f32.mxu0 0.0
        %1227 = vmatmul.mubr.f32.gmra.mxu0 %v1145
        %v1228 = vpop.f32.mrf.mxu0
        %v1229 = vadd.f32 0.0, %v1228
        %v1230 = vpop.f32.mrf.mxu0
        %1231 = vdwg.mxu0
        %v1232 = vadd.f32 %v1037, %v1229
        %v1233 = vld [vmem:[#allocation5 + $0xe7] sm:$0x1]
        %v1234 = vlaneseq
        %v1235 = vshrl.u32 %v1234, 7
        %v1236 = vsub.s32 0, %v1235
        %v1237 = vrot.slane %v1233, %v1236
        %v1238 = vadd.f32 %v1232, %v1237
        %1239 = vst.msk [vmem:[%s173] sm:$0xff] %vm177, %v1238
        %s1240 = sand.u32 %s75, 1
        %s1241 = scalar_lea.sflag [#allocation4], %s1240
        %s1242 = sand.u32 %s75, 1
        %s1243 = smul.addr %s1242, 8
        %s1244 = scalar_lea.vmem [#allocation7], %s1243
        // Predicated region
        $region37: #{tpu_custom_call.1} parent=27 // pred_check
          %p1245 = pneg %p85
        $region38: #{tpu_custom_call.1} parent=27 // pred_check_branch
          %1247 = sbr.rel (%p1245) target = $region40
        $region39: #{tpu_custom_call.1} parent=27 // pred_region
          %s1249 = ssub.s32 128, 128
          %1250 = vsyncadd %s1241, %s1249
          %s1251 = smul.addr %s20, 128
          %s1252 = scalar_lea.hbm %s2, %s1251
          %s1254 = sshll.u32 %s1244, 4
          %s1255 = int_to_ptr.vmem [resolvable:$true] %s1254
          %1257 = dma.vmem_to_hbm [thread:$0]  %s1255, 128, %s1252, %s1241
        $region40: #{tpu_custom_call.1} parent=27 // pred_fallthru
          _
      $region28: #{tpu_custom_call.1} parent=5 // pred_fallthru
        _
      %p1258 = scmp.le.s32.totalorder 2, %s15
      // Predicated region
      $region41: #{tpu_custom_call.1} parent=5 // pred_check
        %p1259 = pneg %p1258
      $region42: #{tpu_custom_call.1} parent=5 // pred_check_branch
        %1261 = sbr.rel (%p1259) target = $region44
      $region43: #{tpu_custom_call.1} parent=5 // pred_region
        %s1262 = ssub.s32 %s15, 2
        // Predicated region
        $region45: #{tpu_custom_call.1} parent=43 // pred_check
          %p1263 = pneg %p91
        $region46: #{tpu_custom_call.1} parent=43 // pred_check_branch
          %1265 = sbr.rel (%p1263) target = $region48
        $region47: #{tpu_custom_call.1} parent=43 // pred_region
          %s1266 = sand.u32 %s76, 1
          %s1267 = scalar_lea.sflag [#allocation4], %s1266
          %s1268 = sand.u32 %s76, 1
          %s1269 = smul.addr %s1268, 8
          %s1270 = scalar_lea.vmem [#allocation7], %s1269
          %1271 = dma.done %s1267, 128
        $region48: #{tpu_custom_call.1} parent=43 // pred_fallthru
          _
      $region44: #{tpu_custom_call.1} parent=5 // pred_fallthru
        _
    $region6: #{tpu_custom_call.1} parent=1 // loop_footer
      %s19 = sadd.s32 1, %s15
    $region7: #{tpu_custom_call.1} parent=1 // loop_footer_branch
      %14 = sbr.rel target = $region3
    $region8: #{tpu_custom_call.1} parent=1 // loop_exit
      _
    %1272 = vsyncpa [#allocation3], 1
    %s1273 = scalar_lea.sflag [#allocation3], 1
    %1274 = vsyncpa %s1273, 1
    %1275 = vsyncpa [#allocation6], 1
    %1276 = vsyncpa [#allocation4], 1
    %s1277 = scalar_lea.sflag [#allocation4], 1
    %1278 = vsyncpa %s1277, 1

</llo_original>
